<compile_context>
chip_gen: v7x
topology: tpu7x:2x2x1
jax: 0.10.0
libtpu: 0.0.40
codegen_flags: <defaults>
</compile_context>

<pallas_src>
import numpy as np
import jax
import jax.numpy as jnp
from jax import lax
from jax.experimental import pallas as pl
from jax.experimental.pallas import tpu as pltpu

# ---------------- config (fixed by the module: Linear(256,128), d_model=128) ---
DIM = 128            # swin dim / d_model
D_K = 64             # LowRankBilinearAttention d_k
D_V = 256            # LowRankBilinearAttention d_v
NUM_HEADS = 4
HEAD_DIM = DIM // NUM_HEADS
WINDOW = 4
N_TOK = WINDOW * WINDOW
MLP_RATIO = 4.0
HIDDEN = int(DIM * MLP_RATIO)
EPS = 1e-5

# Matmul compute dtype.  jnp.bfloat16 reaches MXU peak on v6e/v7x and halves
# activation DMA bytes; left at float32 until tolerance-validated vs PyTorch.
MM_DTYPE = jnp.float32


# ---------------- small in-kernel helpers ----------------
def _mm(a, b):
    return jnp.dot(a.astype(MM_DTYPE), b.astype(MM_DTYPE),
                   preferred_element_type=jnp.float32)


def _softmax_last(s):
    s = s - jnp.max(s, axis=-1, keepdims=True)
    e = jnp.exp(s)
    return e * pl.reciprocal(jnp.sum(e, axis=-1, keepdims=True), approx=True)


def _layernorm(x, g, b):
    mu = jnp.mean(x, axis=-1, keepdims=True)
    var = jnp.mean((x - mu) ** 2, axis=-1, keepdims=True)
    return (x - mu) * lax.rsqrt(var + EPS) * g + b


def _full_spec(shape):
    return pl.BlockSpec(shape, lambda *_, n=len(shape): (0,) * n)


# ================ kernel A: low-rank bilinear cross-attn + proj + res + LN1 ====
def cross_attn_ln1_kernel(x_ref, t_ref, wq_ref, bq_ref, wkv_ref, bkv_ref,
                          wp_ref, bp_ref, g1_ref, b1_ref, y_ref, ln_ref):
    x = x_ref[0]                                        # (TL, C)
    t = t_ref[0]                                        # (T,  C)
    q = _mm(x, wq_ref[...]) + bq_ref[...]               # (TL, d_k)
    kv = _mm(t, wkv_ref[...]) + bkv_ref[...]            # fused K|V proj: (T, d_k+d_v)
    k = kv[:, :D_K]
    v = kv[:, D_K:]
    # NOTE: scores are (TL, T) with T=8 -> lane-sparse; accepted (documented)
    # since the text length is tiny and this path is not the bottleneck.
    s = _mm(q, k.T) * (1.0 / np.sqrt(D_K))
    p = _softmax_last(s)
    o = _mm(p, v)                                       # (TL, d_v)
    y = _mm(o, wp_ref[...]) + bp_ref[...] + x           # proj(low_rank) + x
    y_ref[0] = y                                        # shortcut
    ln_ref[0] = _layernorm(y, g1_ref[...], b1_ref[...]) # norm1(x)


def _seq_tile(L, target=512):
    if L <= target:
        return L
    t = (target // 8) * 8
    while t >= 8:
        if L % t == 0:
            return t
        t -= 8
    return L


def cross_attn_proj_ln(x, text, p):
    B, L, C = x.shape
    T = text.shape[1]
    TL = _seq_tile(L)                                   # L tiled for VMEM scaling
    tok = pl.BlockSpec((1, TL, C), lambda b, i: (b, i, 0))
    txt = pl.BlockSpec((1, T, C), lambda b, i: (b, 0, 0))
    return pl.pallas_call(
        cross_attn_ln1_kernel,
        out_shape=(jax.ShapeDtypeStruct((B, L, C), jnp.float32),
                   jax.ShapeDtypeStruct((B, L, C), jnp.float32)),
        grid=(B, L // TL),
        in_specs=[tok, txt,
                  _full_spec((C, D_K)), _full_spec((1, D_K)),
                  _full_spec((C, D_K + D_V)), _full_spec((1, D_K + D_V)),
                  _full_spec((D_V, C)), _full_spec((1, C)),
                  _full_spec((1, C)), _full_spec((1, C))],
        out_specs=(tok, tok),
        compiler_params=pltpu.CompilerParams(
            dimension_semantics=("parallel", "parallel")),
    )(x, text, p['wq'], p['bq'], p['wkv'], p['bkv'],
      p['wp'], p['bp'], p['g1'], p['b1'])


# ====== kernel B: window MSA (+rel bias, +mask) fused with shortcut+LN2+MLP ====
def _window_attn_mlp_body(x_ref, sc_ref, mask_ref,
                          wqkv_ref, bqkv_ref, wpr_ref, bpr_ref, rpb_ref,
                          g2_ref, b2_ref, w1_ref, bb1_ref, w2_ref, bb2_ref,
                          out_ref):
    ws, C, N = WINDOW, DIM, N_TOK
    xr = x_ref[0]                                       # (ws, Wp, C): one row of windows
    Wp = xr.shape[1]
    nw = Wp // ws
    scale = HEAD_DIM ** -0.5

    # window partition entirely in VMEM (leading-dim transpose, lane dim kept)
    xw = jnp.transpose(xr.reshape(ws, nw, ws, C), (1, 0, 2, 3)).reshape(nw * N, C)

    qkv = _mm(xw, wqkv_ref[...]) + bqkv_ref[...]        # (nw*N, 3C)
    rpb = rpb_ref[...]                                  # (H, N, N)
    m = mask_ref[...] if mask_ref is not None else None # (nw, N, N) or None
    wpr = wpr_ref[...]                                  # (C, C)

    # static unroll over heads; output projection folded per head (no lane concat)
    proj = jnp.zeros((nw * N, C), jnp.float32)
    for h in range(NUM_HEADS):
        lo = h * HEAD_DIM
        q = (qkv[:, lo:lo + HEAD_DIM] * scale).reshape(nw, N, HEAD_DIM)
        k = qkv[:, C + lo:C + lo + HEAD_DIM].reshape(nw, N, HEAD_DIM)
        v = qkv[:, 2 * C + lo:2 * C + lo + HEAD_DIM].reshape(nw, N, HEAD_DIM)
        a = jnp.einsum('wnd,wmd->wnm', q.astype(MM_DTYPE), k.astype(MM_DTYPE),
                       preferred_element_type=jnp.float32)      # (nw, N, N)
        a = a + rpb[h][None, :, :]
        if m is not None:
            a = a + m
        a = _softmax_last(a)
        o = jnp.einsum('wnm,wmd->wnd', a.astype(MM_DTYPE), v.astype(MM_DTYPE),
                       preferred_element_type=jnp.float32)      # (nw, N, hd)
        proj = proj + _mm(o.reshape(nw * N, HEAD_DIM), wpr[lo:lo + HEAD_DIM, :])
    attn = proj + bpr_ref[...]                          # (nw*N, C)

    # window reverse (still in VMEM) back to row order, then fused
    # shortcut-add + LN2 + MLP + residual (all token-local).
    attn_row = jnp.transpose(attn.reshape(nw, ws, ws, C),
                             (1, 0, 2, 3)).reshape(ws * Wp, C)
    z = sc_ref[0].reshape(ws * Wp, C) + attn_row
    ln2 = _layernorm(z, g2_ref[...], b2_ref[...])
    hdn = _mm(ln2, w1_ref[...]) + bb1_ref[...]
    hdn = 0.5 * hdn * (1.0 + lax.erf(hdn * (1.0 / np.sqrt(2.0))))  # exact GELU
    out = z + _mm(hdn, w2_ref[...]) + bb2_ref[...]
    out_ref[0] = out.reshape(ws, Wp, C)


def window_attn_mlp_kernel_masked(x_ref, sc_ref, mask_ref, *rest):
    _window_attn_mlp_body(x_ref, sc_ref, mask_ref, *rest)


def window_attn_mlp_kernel_unmasked(x_ref, sc_ref, *rest):
    _window_attn_mlp_body(x_ref, sc_ref, None, *rest)


def fused_window_attn_mlp(x_ln_s, shortcut_s, mask, p):
    B, Hp, Wp, C = x_ln_s.shape
    ws = WINDOW
    n_row = Hp // ws
    n_col = Wp // ws
    row = pl.BlockSpec((1, ws, Wp, C), lambda b, r: (b, r, 0, 0))
    in_specs = [row, row]
    args = [x_ln_s, shortcut_s]
    if mask is not None:
        in_specs.append(pl.BlockSpec((n_col, N_TOK, N_TOK), lambda b, r: (r, 0, 0)))
        args.append(mask)
        kernel = window_attn_mlp_kernel_masked
    else:                         # shift==0: no zero-mask DMA, no '+ m' adds
        kernel = window_attn_mlp_kernel_unmasked
    in_specs += [_full_spec((C, 3 * C)), _full_spec((1, 3 * C)),
                 _full_spec((C, C)), _full_spec((1, C)),
                 _full_spec((NUM_HEADS, N_TOK, N_TOK)),
                 _full_spec((1, C)), _full_spec((1, C)),
                 _full_spec((C, HIDDEN)), _full_spec((1, HIDDEN)),
                 _full_spec((HIDDEN, C)), _full_spec((1, C))]
    args += [p['wqkv'], p['bqkv'], p['wproj'], p['bproj'], p['rel_bias'],
             p['g2'], p['b2'], p['w1'], p['bb1'], p['w2'], p['bb2']]
    # (input_output_aliases on shortcut_s would save one HBM alloc; omitted
    #  to keep buffer ownership trivially safe.)
    return pl.pallas_call(
        kernel,
        out_shape=jax.ShapeDtypeStruct((B, Hp, Wp, C), jnp.float32),
        grid=(B, n_row),
        in_specs=in_specs,
        out_specs=row,
        compiler_params=pltpu.CompilerParams(
            dimension_semantics=("parallel", "parallel")),
    )(*args)


# ---------------- host-side helpers (mask, rel-pos bias, params) ----------------
def compute_attn_mask(H, W, ws, ss):
    """(0 / -100) additive mask (nW, N, N) for the shifted (SW-MSA) block."""
    Hp = int(np.ceil(H / ws)) * ws
    Wp = int(np.ceil(W / ws)) * ws
    img = np.zeros((Hp, Wp), np.float32)
    slices = (slice(0, -ws), slice(-ws, -ss), slice(-ss, None))
    cnt = 0
    for h in slices:
        for w in slices:
            img[h, w] = cnt
            cnt += 1
    mw = img.reshape(Hp // ws, ws, Wp // ws, ws).transpose(0, 2, 1, 3).reshape(-1, ws * ws)
    am = mw[:, None, :] - mw[:, :, None]
    am = np.where(am != 0, -100.0, 0.0).astype(np.float32)
    return jnp.asarray(am)


def relative_position_index(ws):
    coords = np.stack(np.meshgrid(np.arange(ws), np.arange(ws), indexing='ij'))
    cf = coords.reshape(2, -1)
    rel = cf[:, :, None] - cf[:, None, :]
    rel = rel.transpose(1, 2, 0).copy()
    rel[:, :, 0] += ws - 1
    rel[:, :, 1] += ws - 1
    rel[:, :, 0] *= 2 * ws - 1
    return rel.sum(-1)                                   # (N, N)


def init_block_params(key):
    ks = jax.random.split(key, 15)
    nrm = lambda k, shape, std=0.02: (std * jax.random.normal(k, shape)).astype(jnp.float32)
    rpb_table = np.asarray(nrm(ks[14], ((2 * WINDOW - 1) ** 2, NUM_HEADS)))
    rpi = relative_position_index(WINDOW).reshape(-1)
    rel_bias = jnp.asarray(rpb_table[rpi].reshape(N_TOK, N_TOK, NUM_HEADS).transpose(2, 0, 1))
    return dict(
        # LowRankBilinearAttention (K|V fused) + proj(256->128)
        wq=nrm(ks[0], (DIM, D_K)), bq=nrm(ks[1], (1, D_K)),
        wkv=nrm(ks[2], (DIM, D_K + D_V)), bkv=nrm(ks[3], (1, D_K + D_V)),
        wp=nrm(ks[4], (D_V, DIM)), bp=nrm(ks[5], (1, DIM)),
        # norms (PyTorch init: gamma=1, beta=0)
        g1=jnp.ones((1, DIM), jnp.float32), b1=jnp.zeros((1, DIM), jnp.float32),
        g2=jnp.ones((1, DIM), jnp.float32), b2=jnp.zeros((1, DIM), jnp.float32),
        # WindowAttention
        wqkv=nrm(ks[6], (DIM, 3 * DIM)), bqkv=nrm(ks[7], (1, 3 * DIM)),
        wproj=nrm(ks[8], (DIM, DIM)), bproj=nrm(ks[9], (1, DIM)),
        rel_bias=rel_bias,
        # Mlp
        w1=nrm(ks[10], (DIM, HIDDEN)), bb1=nrm(ks[11], (1, HIDDEN)),
        w2=nrm(ks[12], (HIDDEN, DIM)), bb2=nrm(ks[13], (1, DIM)),
    )


# ---------------- SwinTransformerBlock.forward equivalent ----------------
def swin_block_forward(x, text, mask_matrix, H, W, shift_size, p):
    """dropout / drop_path / attn_drop are identity (p=0 / eval), as in the module."""
    B, L, C = x.shape
    assert L == H * W, 'input feature has wrong size'
    ws = WINDOW

    # kernel A: x = proj(low_rank_bilinear(x, text)) + x ; x_ln = norm1(x)
    shortcut, x_ln = cross_attn_proj_ln(x, text, p)

    xs = x_ln.reshape(B, H, W, C)
    ss = shortcut.reshape(B, H, W, C)
    pad_r = (ws - W % ws) % ws
    pad_b = (ws - H % ws) % ws
    if pad_r or pad_b:
        pad = ((0, 0), (0, pad_b), (0, pad_r), (0, 0))
        xs = jnp.pad(xs, pad)
        ss = jnp.pad(ss, pad)

    # Residual / LN2 / MLP are token-local, so they are computed inside the
    # fused kernel in (shifted, padded) space; roll/crop commute with them.
    if shift_size > 0:
        xs = jnp.roll(xs, shift=(-shift_size, -shift_size), axis=(1, 2))
        ss = jnp.roll(ss, shift=(-shift_size, -shift_size), axis=(1, 2))
        out = fused_window_attn_mlp(xs, ss, mask_matrix, p)
        out = jnp.roll(out, shift=(shift_size, shift_size), axis=(1, 2))
    else:
        out = fused_window_attn_mlp(xs, ss, None, p)

    if pad_r or pad_b:
        out = out[:, :H, :W, :]
    return out.reshape(B, H * W, C)


if __name__ == "__main__":
    B, H, W, T = 2, 8, 8, 8
    key = jax.random.PRNGKey(0)
    kx, kt, kp0, kp1 = jax.random.split(key, 4)
    x = jax.random.normal(kx, (B, H * W, DIM), jnp.float32)
    text = jax.random.normal(kt, (B, T, DIM), jnp.float32)
    p0 = init_block_params(kp0)
    p1 = init_block_params(kp1)
    mask = compute_attn_mask(H, W, WINDOW, WINDOW // 2)

    # W-MSA block (shift=0) followed by SW-MSA block (shift=window//2),
    # exactly how consecutive SwinTransformerBlocks are driven by BasicLayer.
    y = swin_block_forward(x, text, mask, H, W, 0, p0)
    y = swin_block_forward(y, text, mask, H, W, WINDOW // 2, p1)
    jax.block_until_ready(y)
    assert y.shape == (B, H * W, DIM)
    assert bool(jnp.all(jnp.isfinite(y)))
    print("KERNEL_OK")
</pallas_src>

<mosaic_0001>
module attributes {stable_mosaic.version = 11 : i64} {
  func.func @cross_attn_ln1_kernel(%arg0: i32, %arg1: i32, %arg2: memref<1x64x128xf32, #tpu.memory_space<vmem>>, %arg3: memref<1x8x128xf32, #tpu.memory_space<vmem>>, %arg4: memref<128x64xf32, #tpu.memory_space<vmem>>, %arg5: memref<1x64xf32, #tpu.memory_space<vmem>>, %arg6: memref<128x320xf32, #tpu.memory_space<vmem>>, %arg7: memref<1x320xf32, #tpu.memory_space<vmem>>, %arg8: memref<256x128xf32, #tpu.memory_space<vmem>>, %arg9: memref<1x128xf32, #tpu.memory_space<vmem>>, %arg10: memref<1x128xf32, #tpu.memory_space<vmem>>, %arg11: memref<1x128xf32, #tpu.memory_space<vmem>>, %arg12: memref<1x64x128xf32, #tpu.memory_space<vmem>>, %arg13: memref<1x64x128xf32, #tpu.memory_space<vmem>>) attributes {dimension_semantics = [#tpu.dimension_semantics<parallel>, #tpu.dimension_semantics<parallel>], iteration_bounds = array<i64: 2, 1>, scalar_prefetch = 0 : i64, scratch_operands = 0 : i64, tpu.core_type = #tpu.core_type<tc>, window_params = [{transform_indices = @transform_0, window_bounds = array<i64: 1, 64, 128>}, {transform_indices = @transform_1, window_bounds = array<i64: 1, 8, 128>}, {pipeline_mode = #tpu.pipeline_mode<synchronous>, transform_indices = @transform_2, window_bounds = array<i64: 128, 64>}, {pipeline_mode = #tpu.pipeline_mode<synchronous>, transform_indices = @transform_3, window_bounds = array<i64: 1, 64>}, {pipeline_mode = #tpu.pipeline_mode<synchronous>, transform_indices = @transform_4, window_bounds = array<i64: 128, 320>}, {pipeline_mode = #tpu.pipeline_mode<synchronous>, transform_indices = @transform_5, window_bounds = array<i64: 1, 320>}, {pipeline_mode = #tpu.pipeline_mode<synchronous>, transform_indices = @transform_6, window_bounds = array<i64: 256, 128>}, {pipeline_mode = #tpu.pipeline_mode<synchronous>, transform_indices = @transform_7, window_bounds = array<i64: 1, 128>}, {pipeline_mode = #tpu.pipeline_mode<synchronous>, transform_indices = @transform_8, window_bounds = array<i64: 1, 128>}, {pipeline_mode = #tpu.pipeline_mode<synchronous>, transform_indices = @transform_9, window_bounds = array<i64: 1, 128>}, {transform_indices = @transform_10, window_bounds = array<i64: 1, 64, 128>}, {transform_indices = @transform_11, window_bounds = array<i64: 1, 64, 128>}]} {
    %c0 = arith.constant 0 : index
    %c0_0 = arith.constant 0 : index
    %c0_1 = arith.constant 0 : index
    %0 = vector.load %arg2[%c0, %c0_0, %c0_1] : memref<1x64x128xf32, #tpu.memory_space<vmem>>, vector<1x64x128xf32>
    %1 = vector.shape_cast %0 : vector<1x64x128xf32> to vector<64x128xf32>
    %c0_2 = arith.constant 0 : index
    %c0_3 = arith.constant 0 : index
    %c0_4 = arith.constant 0 : index
    %2 = vector.load %arg3[%c0_2, %c0_3, %c0_4] : memref<1x8x128xf32, #tpu.memory_space<vmem>>, vector<1x8x128xf32>
    %3 = vector.shape_cast %2 : vector<1x8x128xf32> to vector<8x128xf32>
    %c0_5 = arith.constant 0 : index
    %c0_6 = arith.constant 0 : index
    %4 = vector.load %arg4[%c0_5, %c0_6] : memref<128x64xf32, #tpu.memory_space<vmem>>, vector<128x64xf32>
    %cst = arith.constant dense<0.000000e+00> : vector<64x64xf32>
    %5 = tpu.matmul %1, %4, %cst {dimension_numbers = #tpu.dot_dimension_numbers<[1], [0], [0], [1], [0, 0, 1, 1], [], []>} : vector<64x128xf32>, vector<128x64xf32>, vector<64x64xf32> -> vector<64x64xf32>
    %c0_7 = arith.constant 0 : index
    %c0_8 = arith.constant 0 : index
    %6 = vector.load %arg5[%c0_7, %c0_8] : memref<1x64xf32, #tpu.memory_space<vmem>>, vector<1x64xf32>
    %7 = vector.broadcast %6 : vector<1x64xf32> to vector<64x64xf32>
    %8 = arith.addf %5, %7 : vector<64x64xf32>
    %c0_9 = arith.constant 0 : index
    %c0_10 = arith.constant 0 : index
    %9 = vector.load %arg6[%c0_9, %c0_10] : memref<128x320xf32, #tpu.memory_space<vmem>>, vector<128x320xf32>
    %cst_11 = arith.constant dense<0.000000e+00> : vector<8x320xf32>
    %10 = tpu.matmul %3, %9, %cst_11 {dimension_numbers = #tpu.dot_dimension_numbers<[1], [0], [0], [1], [0, 0, 1, 1], [], []>} : vector<8x128xf32>, vector<128x320xf32>, vector<8x320xf32> -> vector<8x320xf32>
    %c0_12 = arith.constant 0 : index
    %c0_13 = arith.constant 0 : index
    %11 = vector.load %arg7[%c0_12, %c0_13] : memref<1x320xf32, #tpu.memory_space<vmem>>, vector<1x320xf32>
    %12 = vector.broadcast %11 : vector<1x320xf32> to vector<8x320xf32>
    %13 = arith.addf %10, %12 : vector<8x320xf32>
    %14 = vector.extract_strided_slice %13 {offsets = [0, 0], sizes = [8, 64], strides = [1, 1]} : vector<8x320xf32> to vector<8x64xf32>
    %15 = vector.extract_strided_slice %13 {offsets = [0, 64], sizes = [8, 256], strides = [1, 1]} : vector<8x320xf32> to vector<8x256xf32>
    %16 = tpu.transpose %14, [1, 0] : vector<8x64xf32> -> vector<64x8xf32>
    %cst_14 = arith.constant dense<0.000000e+00> : vector<64x8xf32>
    %17 = tpu.matmul %8, %16, %cst_14 {dimension_numbers = #tpu.dot_dimension_numbers<[1], [0], [0], [1], [0, 0, 1, 1], [], []>} : vector<64x64xf32>, vector<64x8xf32>, vector<64x8xf32> -> vector<64x8xf32>
    %cst_15 = arith.constant 1.250000e-01 : f32
    %18 = vector.broadcast %cst_15 : f32 to vector<64x8xf32>
    %19 = arith.mulf %17, %18 : vector<64x8xf32>
    %cst_16 = arith.constant dense<0xFF800000> : vector<64xf32>
    %20 = vector.multi_reduction <maximumf>, %19, %cst_16 [1] : vector<64x8xf32> to vector<64xf32>
    %21 = vector.shape_cast %20 : vector<64xf32> to vector<64x1xf32>
    %22 = vector.broadcast %21 : vector<64x1xf32> to vector<64x8xf32>
    %23 = arith.subf %19, %22 : vector<64x8xf32>
    %24 = math.exp %23 : vector<64x8xf32>
    %cst_17 = arith.constant dense<0.000000e+00> : vector<64xf32>
    %25 = vector.multi_reduction <add>, %24, %cst_17 [1] : vector<64x8xf32> to vector<64xf32>
    %26 = vector.shape_cast %25 : vector<64xf32> to vector<64x1xf32>
    %27 = tpu.reciprocal %26 {approx = true} : vector<64x1xf32> -> vector<64x1xf32>
    %28 = vector.broadcast %27 : vector<64x1xf32> to vector<64x8xf32>
    %29 = arith.mulf %24, %28 : vector<64x8xf32>
    %cst_18 = arith.constant dense<0.000000e+00> : vector<64x256xf32>
    %30 = tpu.matmul %29, %15, %cst_18 {dimension_numbers = #tpu.dot_dimension_numbers<[1], [0], [0], [1], [0, 0, 1, 1], [], []>} : vector<64x8xf32>, vector<8x256xf32>, vector<64x256xf32> -> vector<64x256xf32>
    %c0_19 = arith.constant 0 : index
    %c0_20 = arith.constant 0 : index
    %31 = vector.load %arg8[%c0_19, %c0_20] : memref<256x128xf32, #tpu.memory_space<vmem>>, vector<256x128xf32>
    %cst_21 = arith.constant dense<0.000000e+00> : vector<64x128xf32>
    %32 = tpu.matmul %30, %31, %cst_21 {dimension_numbers = #tpu.dot_dimension_numbers<[1], [0], [0], [1], [0, 0, 1, 1], [], []>} : vector<64x256xf32>, vector<256x128xf32>, vector<64x128xf32> -> vector<64x128xf32>
    %c0_22 = arith.constant 0 : index
    %c0_23 = arith.constant 0 : index
    %33 = vector.load %arg9[%c0_22, %c0_23] : memref<1x128xf32, #tpu.memory_space<vmem>>, vector<1x128xf32>
    %34 = vector.broadcast %33 : vector<1x128xf32> to vector<64x128xf32>
    %35 = arith.addf %32, %34 : vector<64x128xf32>
    %36 = arith.addf %35, %1 : vector<64x128xf32>
    %c0_24 = arith.constant 0 : index
    %c0_25 = arith.constant 0 : index
    %c0_26 = arith.constant 0 : index
    %37 = vector.load %arg12[%c0_24, %c0_25, %c0_26] : memref<1x64x128xf32, #tpu.memory_space<vmem>>, vector<1x64x128xf32>
    %38 = vector.shape_cast %37 : vector<1x64x128xf32> to vector<64x128xf32>
    %39 = vector.shape_cast %36 : vector<64x128xf32> to vector<1x64x128xf32>
    tpu.vector_store %arg12[%c0_24, %c0_25, %c0_26], %39 {strides = array<i32>} : memref<1x64x128xf32, #tpu.memory_space<vmem>>, vector<1x64x128xf32>,
    %c0_27 = arith.constant 0 : index
    %c0_28 = arith.constant 0 : index
    %40 = vector.load %arg10[%c0_27, %c0_28] : memref<1x128xf32, #tpu.memory_space<vmem>>, vector<1x128xf32>
    %c0_29 = arith.constant 0 : index
    %c0_30 = arith.constant 0 : index
    %41 = vector.load %arg11[%c0_29, %c0_30] : memref<1x128xf32, #tpu.memory_space<vmem>>, vector<1x128xf32>
    %cst_31 = arith.constant dense<0.000000e+00> : vector<64xf32>
    %42 = vector.multi_reduction <add>, %36, %cst_31 [1] : vector<64x128xf32> to vector<64xf32>
    %43 = vector.shape_cast %42 : vector<64xf32> to vector<64x1xf32>
    %cst_32 = arith.constant 1.280000e+02 : f32
    %44 = vector.broadcast %cst_32 : f32 to vector<64x1xf32>
    %45 = arith.divf %43, %44 : vector<64x1xf32>
    %46 = vector.broadcast %45 : vector<64x1xf32> to vector<64x128xf32>
    %47 = arith.subf %36, %46 : vector<64x128xf32>
    %48 = arith.mulf %47, %47 : vector<64x128xf32>
    %cst_33 = arith.constant dense<0.000000e+00> : vector<64xf32>
    %49 = vector.multi_reduction <add>, %48, %cst_33 [1] : vector<64x128xf32> to vector<64xf32>
    %50 = vector.shape_cast %49 : vector<64xf32> to vector<64x1xf32>
    %cst_34 = arith.constant 1.280000e+02 : f32
    %51 = vector.broadcast %cst_34 : f32 to vector<64x1xf32>
    %52 = arith.divf %50, %51 : vector<64x1xf32>
    %53 = vector.broadcast %45 : vector<64x1xf32> to vector<64x128xf32>
    %54 = arith.subf %36, %53 : vector<64x128xf32>
    %cst_35 = arith.constant 9.99999974E-6 : f32
    %55 = vector.broadcast %cst_35 : f32 to vector<64x1xf32>
    %56 = arith.addf %52, %55 : vector<64x1xf32>
    %57 = math.rsqrt %56 : vector<64x1xf32>
    %58 = vector.broadcast %57 : vector<64x1xf32> to vector<64x128xf32>
    %59 = arith.mulf %54, %58 : vector<64x128xf32>
    %60 = vector.broadcast %40 : vector<1x128xf32> to vector<64x128xf32>
    %61 = arith.mulf %59, %60 : vector<64x128xf32>
    %62 = vector.broadcast %41 : vector<1x128xf32> to vector<64x128xf32>
    %63 = arith.addf %61, %62 : vector<64x128xf32>
    %c0_36 = arith.constant 0 : index
    %c0_37 = arith.constant 0 : index
    %c0_38 = arith.constant 0 : index
    %64 = vector.load %arg13[%c0_36, %c0_37, %c0_38] : memref<1x64x128xf32, #tpu.memory_space<vmem>>, vector<1x64x128xf32>
    %65 = vector.shape_cast %64 : vector<1x64x128xf32> to vector<64x128xf32>
    %66 = vector.shape_cast %63 : vector<64x128xf32> to vector<1x64x128xf32>
    tpu.vector_store %arg13[%c0_36, %c0_37, %c0_38], %66 {strides = array<i32>} : memref<1x64x128xf32, #tpu.memory_space<vmem>>, vector<1x64x128xf32>,
    return
  }
  func.func @transform_0(%arg0: i32, %arg1: i32) -> (i32, i32, i32) {
    %c0_i32 = arith.constant 0 : i32
    %c0_i32_0 = arith.constant 0 : i32
    return %arg0, %arg1, %c0_i32 : i32, i32, i32
  }
  func.func @transform_1(%arg0: i32, %arg1: i32) -> (i32, i32, i32) {
    %c0_i32 = arith.constant 0 : i32
    %c0_i32_0 = arith.constant 0 : i32
    %c0_i32_1 = arith.constant 0 : i32
    return %arg0, %c0_i32, %c0_i32_0 : i32, i32, i32
  }
  func.func @transform_2(%arg0: i32, %arg1: i32) -> (i32, i32) {
    %c0_i32 = arith.constant 0 : i32
    %c0_i32_0 = arith.constant 0 : i32
    %c0_i32_1 = arith.constant 0 : i32
    return %c0_i32, %c0_i32_0 : i32, i32
  }
  func.func @transform_3(%arg0: i32, %arg1: i32) -> (i32, i32) {
    %c0_i32 = arith.constant 0 : i32
    %c0_i32_0 = arith.constant 0 : i32
    %c0_i32_1 = arith.constant 0 : i32
    return %c0_i32, %c0_i32_0 : i32, i32
  }
  func.func @transform_4(%arg0: i32, %arg1: i32) -> (i32, i32) {
    %c0_i32 = arith.constant 0 : i32
    %c0_i32_0 = arith.constant 0 : i32
    %c0_i32_1 = arith.constant 0 : i32
    return %c0_i32, %c0_i32_0 : i32, i32
  }
  func.func @transform_5(%arg0: i32, %arg1: i32) -> (i32, i32) {
    %c0_i32 = arith.constant 0 : i32
    %c0_i32_0 = arith.constant 0 : i32
    %c0_i32_1 = arith.constant 0 : i32
    return %c0_i32, %c0_i32_0 : i32, i32
  }
  func.func @transform_6(%arg0: i32, %arg1: i32) -> (i32, i32) {
    %c0_i32 = arith.constant 0 : i32
    %c0_i32_0 = arith.constant 0 : i32
    %c0_i32_1 = arith.constant 0 : i32
    return %c0_i32, %c0_i32_0 : i32, i32
  }
  func.func @transform_7(%arg0: i32, %arg1: i32) -> (i32, i32) {
    %c0_i32 = arith.constant 0 : i32
    %c0_i32_0 = arith.constant 0 : i32
    %c0_i32_1 = arith.constant 0 : i32
    return %c0_i32, %c0_i32_0 : i32, i32
  }
  func.func @transform_8(%arg0: i32, %arg1: i32) -> (i32, i32) {
    %c0_i32 = arith.constant 0 : i32
    %c0_i32_0 = arith.constant 0 : i32
    %c0_i32_1 = arith.constant 0 : i32
    return %c0_i32, %c0_i32_0 : i32, i32
  }
  func.func @transform_9(%arg0: i32, %arg1: i32) -> (i32, i32) {
    %c0_i32 = arith.constant 0 : i32
    %c0_i32_0 = arith.constant 0 : i32
    %c0_i32_1 = arith.constant 0 : i32
    return %c0_i32, %c0_i32_0 : i32, i32
  }
  func.func @transform_10(%arg0: i32, %arg1: i32) -> (i32, i32, i32) {
    %c0_i32 = arith.constant 0 : i32
    %c0_i32_0 = arith.constant 0 : i32
    return %arg0, %arg1, %c0_i32 : i32, i32, i32
  }
  func.func @transform_11(%arg0: i32, %arg1: i32) -> (i32, i32, i32) {
    %c0_i32 = arith.constant 0 : i32
    %c0_i32_0 = arith.constant 0 : i32
    return %arg0, %arg1, %c0_i32 : i32, i32, i32
  }
}

</mosaic_0001>

<llo_original>
// kernel: tpu_custom_call.1
$region0: #{tpu_custom_call.1}
  #allocation0 [shape = 'u32[]', space=smem, size = 0x4, offset = 0x4, fixed_abs, tag = 'smem constant byte address 0x4 - core index']
  #allocation1 [shape = 'u32[144,128]{1,0:T(1,128)}', space=vmem, size = 0x12000, scoped, tag = 'internal scratch']
  %s0 = inlined_call_operand.vmem [shape: f32[2,64,128], index: 0, kind: input, shape index: {}]
  %s1 = inlined_call_operand.vmem [shape: f32[2,8,128], index: 1, kind: input, shape index: {}]
  %s2 = inlined_call_operand.vmem [shape: f32[128,64], index: 2, kind: input, shape index: {}]
  %s3 = inlined_call_operand.vmem [shape: f32[1,64], index: 3, kind: input, shape index: {}]
  %s4 = inlined_call_operand.vmem [shape: f32[128,320], index: 4, kind: input, shape index: {}]
  %s5 = inlined_call_operand.vmem [shape: f32[1,320], index: 5, kind: input, shape index: {}]
  %s6 = inlined_call_operand.vmem [shape: f32[256,128], index: 6, kind: input, shape index: {}]
  %s7 = inlined_call_operand.vmem [shape: f32[1,128], index: 7, kind: input, shape index: {}]
  %s8 = inlined_call_operand.vmem [shape: f32[1,128], index: 8, kind: input, shape index: {}]
  %s9 = inlined_call_operand.vmem [shape: f32[1,128], index: 9, kind: input, shape index: {}]
  %s10 = inlined_call_operand.hbm [shape: f32[2,64,128], index: 10, kind: output, shape index: {0}]
  %s11 = inlined_call_operand.hbm [shape: f32[2,64,128], index: 11, kind: output, shape index: {1}]
  %12 = xla_tuple %s10, %s11
  %s13 = sld [smem:[#allocation0]]
  $region81: #{tpu_custom_call.1} parent=0
    _
  %s15 = ssub.s32 1, %s13
  %s16 = scalar_select 0, %s15, %s13
  $region1: #{tpu_custom_call.1} parent=0
    #allocation2 [shape = 'u8[65536]{0}', space=vmem, size = 0x10000, scoped, tag = 'output window, operand 0']
    #allocation3 [shape = 's32[2]{0}', space=sflag, size = 0x8, scoped, tag = 'scoped memory for tpu_custom_call.1']
    #allocation4 [shape = 'u8[65536]{0}', space=vmem, size = 0x10000, scoped, tag = 'output window, operand 1']
    #allocation5 [shape = 's32[2]{0}', space=sflag, size = 0x8, scoped, tag = 'scoped memory for tpu_custom_call.1']
    %17 = vsyncpa [#allocation3], 0
    %s18 = scalar_lea.sflag [#allocation3], 1
    %19 = vsyncpa %s18, 0
    %20 = vsyncpa [#allocation5], 0
    %s21 = scalar_lea.sflag [#allocation5], 1
    %22 = vsyncpa %s21, 0
    loop: start=0, step=1, limit=4
    $region2: #{tpu_custom_call.1} parent=1 // loop_pre_header
      _
    $region3: #{tpu_custom_call.1} parent=1 // loop_header
      %s24 = sphi 0, %s28
      %p25 = scmp.ge.s32.totalorder %s24, 4
      %s31 = sphi 0, %s43
      %s32 = sphi 0, %s39
      %s33 = sphi 0, %s31
      %s34 = sphi 0, %s32
      %s35 = sphi 0, %s33
      %s36 = sphi 0, %s34
      %s48 = sphi 0, %s50
      %s51 = sphi 0, %s48
      %s52 = sphi 0, %s51
      %s68 = sphi 0, %s52
      %s74 = sphi 0, %s76
      %s77 = sphi 0, %s74
      %s78 = sphi 0, %s77
      %s94 = sphi 0, %s78
      %s98 = sphi 0, %s98
      %s100 = sphi 0, %s98
      %s101 = sphi 0, %s100
      %s115 = sphi 0, %s101
      %s119 = sphi 0, %s119
      %s121 = sphi 0, %s119
      %s122 = sphi 0, %s121
      %s136 = sphi 0, %s122
      %s140 = sphi 0, %s140
      %s142 = sphi 0, %s140
      %s143 = sphi 0, %s142
      %s157 = sphi 0, %s143
      %s161 = sphi 0, %s161
      %s163 = sphi 0, %s161
      %s164 = sphi 0, %s163
      %s178 = sphi 0, %s164
      %s182 = sphi 0, %s182
      %s184 = sphi 0, %s182
      %s185 = sphi 0, %s184
      %s199 = sphi 0, %s185
      %s203 = sphi 0, %s203
      %s205 = sphi 0, %s203
      %s206 = sphi 0, %s205
      %s220 = sphi 0, %s206
      %s224 = sphi 0, %s224
      %s226 = sphi 0, %s224
      %s227 = sphi 0, %s226
      %s241 = sphi 0, %s227
      %s245 = sphi 0, %s245
      %s247 = sphi 0, %s245
      %s248 = sphi 0, %s247
      %s262 = sphi 0, %s248
      %s270 = sphi 0, %s272
      %s273 = sphi 0, %s270
      %s274 = sphi 0, %s273
      %s290 = sphi 0, %s274
      %s298 = sphi 0, %s300
      %s301 = sphi 0, %s298
      %s302 = sphi 0, %s301
      %s318 = sphi 0, %s302
    $region4: #{tpu_custom_call.1} parent=1 // loop_header_branch
      %27 = sbr.rel (%p25) target = $region8
    $region5: #{tpu_custom_call.1} parent=1 // loop_body
      %s29 = ssub.s32 %s24, 1
      %s30 = ssub.s32 %s24, 2
      %s37 = sadd.s32 1, %s32
      %p38 = scmp.ge.s32.totalorder %s37, 1
      %s39 = scalar_select %p38, 0, %s37
      %s40 = sadd.s32 1, %s31
      %s41 = scalar_select %p38, %s40, %s31
      %p42 = scmp.ge.s32.totalorder %s41, 2
      %s43 = scalar_select %p42, 0, %s41
      %s44 = ssub.s32 %s31, %s43
      %s45 = ssub.s32 %s32, %s39
      %s46 = sor.u32 %s44, %s45
      %p47 = scmp.eq.s32.totalorder %s46, 0
      %s49 = sadd.s32 %s48, 1
      %s50 = scalar_select %p47, %s48, %s49
      %p53 = pneg %p47
      %p54 = scmp.eq.s32.totalorder %s24, 1
      %p55 = por %p53, %p54
      %p56 = scmp.ne.s32.totalorder %s48, %s51
      %p57 = scmp.eq.s32.totalorder %s24, 0
      %p58 = por %p56, %p57
      %p59 = scmp.ne.s32.totalorder %s48, %s51
      %p60 = scmp.eq.s32.totalorder %s29, 1
      %p61 = por %p59, %p60
      %p62 = scmp.ne.s32.totalorder %s51, %s52
      %p63 = scmp.eq.s32.totalorder %s29, 0
      %p64 = por %p62, %p63
      %p65 = scmp.ne.s32.totalorder %s51, %s52
      %p66 = scmp.eq.s32.totalorder %s30, 1
      %p67 = por %p65, %p66
      %p69 = scmp.ne.s32.totalorder %s52, %s68
      %p70 = scmp.eq.s32.totalorder %s30, 0
      %p71 = por %p69, %p70
      %s72 = ssub.s32 %s31, %s43
      %p73 = scmp.eq.s32.totalorder %s72, 0
      %s75 = sadd.s32 %s74, 1
      %s76 = scalar_select %p73, %s74, %s75
      %p79 = pneg %p73
      %p80 = scmp.eq.s32.totalorder %s24, 1
      %p81 = por %p79, %p80
      %p82 = scmp.ne.s32.totalorder %s74, %s77
      %p83 = scmp.eq.s32.totalorder %s24, 0
      %p84 = por %p82, %p83
      %p85 = scmp.ne.s32.totalorder %s74, %s77
      %p86 = scmp.eq.s32.totalorder %s29, 1
      %p87 = por %p85, %p86
      %p88 = scmp.ne.s32.totalorder %s77, %s78
      %p89 = scmp.eq.s32.totalorder %s29, 0
      %p90 = por %p88, %p89
      %p91 = scmp.ne.s32.totalorder %s77, %s78
      %p92 = scmp.eq.s32.totalorder %s30, 1
      %p93 = por %p91, %p92
      %p95 = scmp.ne.s32.totalorder %s78, %s94
      %p96 = scmp.eq.s32.totalorder %s30, 0
      %p97 = por %p95, %p96
      %s99 = sadd.s32 %s98, 1
      %p102 = scmp.eq.s32.totalorder %s24, 1
      %p103 = scmp.ne.s32.totalorder %s98, %s100
      %p104 = scmp.eq.s32.totalorder %s24, 0
      %p105 = por %p103, %p104
      %p106 = scmp.ne.s32.totalorder %s98, %s100
      %p107 = scmp.eq.s32.totalorder %s29, 1
      %p108 = por %p106, %p107
      %p109 = scmp.ne.s32.totalorder %s100, %s101
      %p110 = scmp.eq.s32.totalorder %s29, 0
      %p111 = por %p109, %p110
      %p112 = scmp.ne.s32.totalorder %s100, %s101
      %p113 = scmp.eq.s32.totalorder %s30, 1
      %p114 = por %p112, %p113
      %p116 = scmp.ne.s32.totalorder %s101, %s115
      %p117 = scmp.eq.s32.totalorder %s30, 0
      %p118 = por %p116, %p117
      %s120 = sadd.s32 %s119, 1
      %p123 = scmp.eq.s32.totalorder %s24, 1
      %p124 = scmp.ne.s32.totalorder %s119, %s121
      %p125 = scmp.eq.s32.totalorder %s24, 0
      %p126 = por %p124, %p125
      %p127 = scmp.ne.s32.totalorder %s119, %s121
      %p128 = scmp.eq.s32.totalorder %s29, 1
      %p129 = por %p127, %p128
      %p130 = scmp.ne.s32.totalorder %s121, %s122
      %p131 = scmp.eq.s32.totalorder %s29, 0
      %p132 = por %p130, %p131
      %p133 = scmp.ne.s32.totalorder %s121, %s122
      %p134 = scmp.eq.s32.totalorder %s30, 1
      %p135 = por %p133, %p134
      %p137 = scmp.ne.s32.totalorder %s122, %s136
      %p138 = scmp.eq.s32.totalorder %s30, 0
      %p139 = por %p137, %p138
      %s141 = sadd.s32 %s140, 1
      %p144 = scmp.eq.s32.totalorder %s24, 1
      %p145 = scmp.ne.s32.totalorder %s140, %s142
      %p146 = scmp.eq.s32.totalorder %s24, 0
      %p147 = por %p145, %p146
      %p148 = scmp.ne.s32.totalorder %s140, %s142
      %p149 = scmp.eq.s32.totalorder %s29, 1
      %p150 = por %p148, %p149
      %p151 = scmp.ne.s32.totalorder %s142, %s143
      %p152 = scmp.eq.s32.totalorder %s29, 0
      %p153 = por %p151, %p152
      %p154 = scmp.ne.s32.totalorder %s142, %s143
      %p155 = scmp.eq.s32.totalorder %s30, 1
      %p156 = por %p154, %p155
      %p158 = scmp.ne.s32.totalorder %s143, %s157
      %p159 = scmp.eq.s32.totalorder %s30, 0
      %p160 = por %p158, %p159
      %s162 = sadd.s32 %s161, 1
      %p165 = scmp.eq.s32.totalorder %s24, 1
      %p166 = scmp.ne.s32.totalorder %s161, %s163
      %p167 = scmp.eq.s32.totalorder %s24, 0
      %p168 = por %p166, %p167
      %p169 = scmp.ne.s32.totalorder %s161, %s163
      %p170 = scmp.eq.s32.totalorder %s29, 1
      %p171 = por %p169, %p170
      %p172 = scmp.ne.s32.totalorder %s163, %s164
      %p173 = scmp.eq.s32.totalorder %s29, 0
      %p174 = por %p172, %p173
      %p175 = scmp.ne.s32.totalorder %s163, %s164
      %p176 = scmp.eq.s32.totalorder %s30, 1
      %p177 = por %p175, %p176
      %p179 = scmp.ne.s32.totalorder %s164, %s178
      %p180 = scmp.eq.s32.totalorder %s30, 0
      %p181 = por %p179, %p180
      %s183 = sadd.s32 %s182, 1
      %p186 = scmp.eq.s32.totalorder %s24, 1
      %p187 = scmp.ne.s32.totalorder %s182, %s184
      %p188 = scmp.eq.s32.totalorder %s24, 0
      %p189 = por %p187, %p188
      %p190 = scmp.ne.s32.totalorder %s182, %s184
      %p191 = scmp.eq.s32.totalorder %s29, 1
      %p192 = por %p190, %p191
      %p193 = scmp.ne.s32.totalorder %s184, %s185
      %p194 = scmp.eq.s32.totalorder %s29, 0
      %p195 = por %p193, %p194
      %p196 = scmp.ne.s32.totalorder %s184, %s185
      %p197 = scmp.eq.s32.totalorder %s30, 1
      %p198 = por %p196, %p197
      %p200 = scmp.ne.s32.totalorder %s185, %s199
      %p201 = scmp.eq.s32.totalorder %s30, 0
      %p202 = por %p200, %p201
      %s204 = sadd.s32 %s203, 1
      %p207 = scmp.eq.s32.totalorder %s24, 1
      %p208 = scmp.ne.s32.totalorder %s203, %s205
      %p209 = scmp.eq.s32.totalorder %s24, 0
      %p210 = por %p208, %p209
      %p211 = scmp.ne.s32.totalorder %s203, %s205
      %p212 = scmp.eq.s32.totalorder %s29, 1
      %p213 = por %p211, %p212
      %p214 = scmp.ne.s32.totalorder %s205, %s206
      %p215 = scmp.eq.s32.totalorder %s29, 0
      %p216 = por %p214, %p215
      %p217 = scmp.ne.s32.totalorder %s205, %s206
      %p218 = scmp.eq.s32.totalorder %s30, 1
      %p219 = por %p217, %p218
      %p221 = scmp.ne.s32.totalorder %s206, %s220
      %p222 = scmp.eq.s32.totalorder %s30, 0
      %p223 = por %p221, %p222
      %s225 = sadd.s32 %s224, 1
      %p228 = scmp.eq.s32.totalorder %s24, 1
      %p229 = scmp.ne.s32.totalorder %s224, %s226
      %p230 = scmp.eq.s32.totalorder %s24, 0
      %p231 = por %p229, %p230
      %p232 = scmp.ne.s32.totalorder %s224, %s226
      %p233 = scmp.eq.s32.totalorder %s29, 1
      %p234 = por %p232, %p233
      %p235 = scmp.ne.s32.totalorder %s226, %s227
      %p236 = scmp.eq.s32.totalorder %s29, 0
      %p237 = por %p235, %p236
      %p238 = scmp.ne.s32.totalorder %s226, %s227
      %p239 = scmp.eq.s32.totalorder %s30, 1
      %p240 = por %p238, %p239
      %p242 = scmp.ne.s32.totalorder %s227, %s241
      %p243 = scmp.eq.s32.totalorder %s30, 0
      %p244 = por %p242, %p243
      %s246 = sadd.s32 %s245, 1
      %p249 = scmp.eq.s32.totalorder %s24, 1
      %p250 = scmp.ne.s32.totalorder %s245, %s247
      %p251 = scmp.eq.s32.totalorder %s24, 0
      %p252 = por %p250, %p251
      %p253 = scmp.ne.s32.totalorder %s245, %s247
      %p254 = scmp.eq.s32.totalorder %s29, 1
      %p255 = por %p253, %p254
      %p256 = scmp.ne.s32.totalorder %s247, %s248
      %p257 = scmp.eq.s32.totalorder %s29, 0
      %p258 = por %p256, %p257
      %p259 = scmp.ne.s32.totalorder %s247, %s248
      %p260 = scmp.eq.s32.totalorder %s30, 1
      %p261 = por %p259, %p260
      %p263 = scmp.ne.s32.totalorder %s248, %s262
      %p264 = scmp.eq.s32.totalorder %s30, 0
      %p265 = por %p263, %p264
      %s266 = ssub.s32 %s31, %s43
      %s267 = ssub.s32 %s32, %s39
      %s268 = sor.u32 %s266, %s267
      %p269 = scmp.eq.s32.totalorder %s268, 0
      %s271 = sadd.s32 %s270, 1
      %s272 = scalar_select %p269, %s270, %s271
      %p275 = pneg %p269
      %p276 = scmp.eq.s32.totalorder %s24, 1
      %p277 = por %p275, %p276
      %p278 = scmp.ne.s32.totalorder %s270, %s273
      %p279 = scmp.eq.s32.totalorder %s24, 0
      %p280 = por %p278, %p279
      %p281 = scmp.ne.s32.totalorder %s270, %s273
      %p282 = scmp.eq.s32.totalorder %s29, 1
      %p283 = por %p281, %p282
      %p284 = scmp.ne.s32.totalorder %s273, %s274
      %p285 = scmp.eq.s32.totalorder %s29, 0
      %p286 = por %p284, %p285
      %p287 = scmp.ne.s32.totalorder %s273, %s274
      %p288 = scmp.eq.s32.totalorder %s30, 1
      %p289 = por %p287, %p288
      %p291 = scmp.ne.s32.totalorder %s274, %s290
      %p292 = scmp.eq.s32.totalorder %s30, 0
      %p293 = por %p291, %p292
      %s294 = ssub.s32 %s31, %s43
      %s295 = ssub.s32 %s32, %s39
      %s296 = sor.u32 %s294, %s295
      %p297 = scmp.eq.s32.totalorder %s296, 0
      %s299 = sadd.s32 %s298, 1
      %s300 = scalar_select %p297, %s298, %s299
      %p303 = pneg %p297
      %p304 = scmp.eq.s32.totalorder %s24, 1
      %p305 = por %p303, %p304
      %p306 = scmp.ne.s32.totalorder %s298, %s301
      %p307 = scmp.eq.s32.totalorder %s24, 0
      %p308 = por %p306, %p307
      %p309 = scmp.ne.s32.totalorder %s298, %s301
      %p310 = scmp.eq.s32.totalorder %s29, 1
      %p311 = por %p309, %p310
      %p312 = scmp.ne.s32.totalorder %s301, %s302
      %p313 = scmp.eq.s32.totalorder %s29, 0
      %p314 = por %p312, %p313
      %p315 = scmp.ne.s32.totalorder %s301, %s302
      %p316 = scmp.eq.s32.totalorder %s30, 1
      %p317 = por %p315, %p316
      %p319 = scmp.ne.s32.totalorder %s302, %s318
      %p320 = scmp.eq.s32.totalorder %s30, 0
      %p321 = por %p319, %p320
      %p322 = scmp.le.s32.totalorder 1, %s24
      %p323 = scmp.lt.s32.totalorder %s24, 3
      %p324 = pnand %p322, %p323
      %p325 = pneg %p324
      // Predicated region
      $region9: #{tpu_custom_call.1} parent=5 // pred_check
        _
      $region10: #{tpu_custom_call.1} parent=5 // pred_check_branch
        %327 = sbr.rel (%p324) target = $region12
      $region11: #{tpu_custom_call.1} parent=5 // pred_region
        %s328 = ssub.s32 %s24, 1
        // Predicated region
        $region13: #{tpu_custom_call.1} parent=11 // pred_check
          %p329 = pneg %p111
        $region14: #{tpu_custom_call.1} parent=11 // pred_check_branch
          %331 = sbr.rel (%p329) target = $region16
        $region15: #{tpu_custom_call.1} parent=11 // pred_region
          _
        $region16: #{tpu_custom_call.1} parent=11 // pred_fallthru
          _
        // Predicated region
        $region17: #{tpu_custom_call.1} parent=11 // pred_check
          %p332 = pneg %p132
        $region18: #{tpu_custom_call.1} parent=11 // pred_check_branch
          %334 = sbr.rel (%p332) target = $region20
        $region19: #{tpu_custom_call.1} parent=11 // pred_region
          _
        $region20: #{tpu_custom_call.1} parent=11 // pred_fallthru
          _
        // Predicated region
        $region21: #{tpu_custom_call.1} parent=11 // pred_check
          %p335 = pneg %p153
        $region22: #{tpu_custom_call.1} parent=11 // pred_check_branch
          %337 = sbr.rel (%p335) target = $region24
        $region23: #{tpu_custom_call.1} parent=11 // pred_region
          _
        $region24: #{tpu_custom_call.1} parent=11 // pred_fallthru
          _
        // Predicated region
        $region25: #{tpu_custom_call.1} parent=11 // pred_check
          %p338 = pneg %p174
        $region26: #{tpu_custom_call.1} parent=11 // pred_check_branch
          %340 = sbr.rel (%p338) target = $region28
        $region27: #{tpu_custom_call.1} parent=11 // pred_region
          _
        $region28: #{tpu_custom_call.1} parent=11 // pred_fallthru
          _
        // Predicated region
        $region29: #{tpu_custom_call.1} parent=11 // pred_check
          %p341 = pneg %p195
        $region30: #{tpu_custom_call.1} parent=11 // pred_check_branch
          %343 = sbr.rel (%p341) target = $region32
        $region31: #{tpu_custom_call.1} parent=11 // pred_region
          _
        $region32: #{tpu_custom_call.1} parent=11 // pred_fallthru
          _
        // Predicated region
        $region33: #{tpu_custom_call.1} parent=11 // pred_check
          %p344 = pneg %p216
        $region34: #{tpu_custom_call.1} parent=11 // pred_check_branch
          %346 = sbr.rel (%p344) target = $region36
        $region35: #{tpu_custom_call.1} parent=11 // pred_region
          _
        $region36: #{tpu_custom_call.1} parent=11 // pred_fallthru
          _
        // Predicated region
        $region37: #{tpu_custom_call.1} parent=11 // pred_check
          %p347 = pneg %p237
        $region38: #{tpu_custom_call.1} parent=11 // pred_check_branch
          %349 = sbr.rel (%p347) target = $region40
        $region39: #{tpu_custom_call.1} parent=11 // pred_region
          _
        $region40: #{tpu_custom_call.1} parent=11 // pred_fallthru
          _
        // Predicated region
        $region41: #{tpu_custom_call.1} parent=11 // pred_check
          %p350 = pneg %p258
        $region42: #{tpu_custom_call.1} parent=11 // pred_check_branch
          %352 = sbr.rel (%p350) target = $region44
        $region43: #{tpu_custom_call.1} parent=11 // pred_region
          _
        $region44: #{tpu_custom_call.1} parent=11 // pred_fallthru
          _
      $region12: #{tpu_custom_call.1} parent=5 // pred_fallthru
        _
      %p353 = scmp.lt.s32.totalorder %s24, 2
      // Predicated region
      $region45: #{tpu_custom_call.1} parent=5 // pred_check
        %p354 = pneg %p353
      $region46: #{tpu_custom_call.1} parent=5 // pred_check_branch
        %356 = sbr.rel (%p354) target = $region48
      $region47: #{tpu_custom_call.1} parent=5 // pred_region
        // Predicated region
        $region49: #{tpu_custom_call.1} parent=47 // pred_check
          %p357 = pneg %p58
        $region50: #{tpu_custom_call.1} parent=47 // pred_check_branch
          %359 = sbr.rel (%p357) target = $region52
        $region51: #{tpu_custom_call.1} parent=47 // pred_region
          %s360 = smul.u32 8, %s32
          %p361 = scmp.lt.s32.totalorder %s31, 1
          %s362 = scalar_select %p361, %s31, 1
          %p363 = scmp.lt.s32.totalorder %s360, 7
          %s364 = scalar_select %p363, %s360, 7
          %s365 = smul.addr %s362, 8
          %s366 = sadd.s32 %s364, %s365
          %s367 = smul.addr %s366, 8
          %s368 = scalar_lea.vmem %s0, %s367
          %s369 = smul.u32 8, %s32
        $region52: #{tpu_custom_call.1} parent=47 // pred_fallthru
          _
        // Predicated region
        $region53: #{tpu_custom_call.1} parent=47 // pred_check
          %p370 = pneg %p84
        $region54: #{tpu_custom_call.1} parent=47 // pred_check_branch
          %372 = sbr.rel (%p370) target = $region56
        $region55: #{tpu_custom_call.1} parent=47 // pred_region
          %p373 = scmp.lt.s32.totalorder %s31, 1
          %s374 = scalar_select %p373, %s31, 1
          %s375 = smul.addr %s374, 8
          %s376 = scalar_lea.vmem %s1, %s375
        $region56: #{tpu_custom_call.1} parent=47 // pred_fallthru
          _
      $region48: #{tpu_custom_call.1} parent=5 // pred_fallthru
        _
      %p377 = scmp.le.s32.totalorder 1, %s24
      %p378 = scmp.lt.s32.totalorder %s24, 3
      %p379 = pnand %p377, %p378
      %p380 = pneg %p379
      // Predicated region
      $region57: #{tpu_custom_call.1} parent=5 // pred_check
        _
      $region58: #{tpu_custom_call.1} parent=5 // pred_check_branch
        %382 = sbr.rel (%p379) target = $region60
      $region59: #{tpu_custom_call.1} parent=5 // pred_region
        %s383 = ssub.s32 %s24, 1
        %s384 = smul.u32 8, %s34
        %p385 = scmp.lt.s32.totalorder %s33, 1
        %s386 = scalar_select %p385, %s33, 1
        %p387 = scmp.lt.s32.totalorder %s384, 7
        %s388 = scalar_select %p387, %s384, 7
        %s389 = smul.addr %s386, 8
        %s390 = sadd.s32 %s388, %s389
        %s391 = smul.addr %s390, 8
        %s392 = scalar_lea.vmem %s0, %s391
        %p393 = pneg %p64
        %p394 = pneg %p61
        %p395 = scmp.lt.s32.totalorder %s33, 1
        %s396 = scalar_select %p395, %s33, 1
        %s397 = smul.addr %s396, 8
        %s398 = scalar_lea.vmem %s1, %s397
        %p399 = pneg %p90
        %p400 = pneg %p87
        %p401 = pneg %p111
        %p402 = pneg %p108
        %p403 = pneg %p132
        %p404 = pneg %p129
        %p405 = pneg %p153
        %p406 = pneg %p150
        %p407 = pneg %p174
        %p408 = pneg %p171
        %p409 = pneg %p195
        %p410 = pneg %p192
        %p411 = pneg %p216
        %p412 = pneg %p213
        %p413 = pneg %p237
        %p414 = pneg %p234
        %p415 = pneg %p258
        %p416 = pneg %p255
        %p417 = pneg %p286
        %p418 = pneg %p283
        %s419 = sand.u32 %s273, 1
        %s420 = scalar_lea.sflag [#allocation3], %s419
        %s421 = sand.u32 %s273, 1
        %s422 = smul.addr %s421, 64
        %s423 = scalar_lea.vmem [#allocation2], %s422
        %p424 = pneg %p314
        %p425 = pneg %p311
        %s426 = sand.u32 %s301, 1
        %s427 = scalar_lea.sflag [#allocation5], %s426
        %s428 = sand.u32 %s301, 1
        %s429 = smul.addr %s428, 64
        %s430 = scalar_lea.vmem [#allocation4], %s429
        %s431 = smul.u32 8, %s34
        %p432 = scmp.lt.s32.totalorder %s33, 1
        %s433 = scalar_select %p432, %s33, 1
        %p434 = scmp.lt.s32.totalorder %s431, 7
        %s435 = scalar_select %p434, %s431, 7
        %s436 = smul.addr %s433, 8
        %s437 = sadd.s32 %s435, %s436
        %s438 = smul.addr %s437, 8
        %s439 = scalar_lea.vmem %s0, %s438
        %s440 = smul.u32 8, %s34
        %p441 = scmp.lt.s32.totalorder %s33, 1
        %s442 = scalar_select %p441, %s33, 1
        %s443 = smul.addr %s442, 8
        %s444 = scalar_lea.vmem %s1, %s443
        %s445 = smul.u32 8, %s34
        %s446 = smul.u32 8, %s34
        %v447 = vld [vmem:[%s439] sm:$0xff]
        %v448 = vld [vmem:[%s439 + $0x8] sm:$0xff]
        %v449 = vld [vmem:[%s439 + $0x10] sm:$0xff]
        %v450 = vld [vmem:[%s439 + $0x18] sm:$0xff]
        %v451 = vld [vmem:[%s439 + $0x20] sm:$0xff]
        %v452 = vld [vmem:[%s439 + $0x28] sm:$0xff]
        %v453 = vld [vmem:[%s439 + $0x30] sm:$0xff]
        %v454 = vld [vmem:[%s439 + $0x38] sm:$0xff]
        %v455 = vld [vmem:[%s444] sm:$0xff]
        %v456 = vld [vmem:[%s2] sm:$0xff]
        %v457 = vld [vmem:[%s2 + $0x8] sm:$0xff]
        %v458 = vld [vmem:[%s2 + $0x10] sm:$0xff]
        %v459 = vld [vmem:[%s2 + $0x18] sm:$0xff]
        %v460 = vld [vmem:[%s2 + $0x20] sm:$0xff]
        %v461 = vld [vmem:[%s2 + $0x28] sm:$0xff]
        %v462 = vld [vmem:[%s2 + $0x30] sm:$0xff]
        %v463 = vld [vmem:[%s2 + $0x38] sm:$0xff]
        %v464 = vld [vmem:[%s2 + $0x40] sm:$0xff]
        %v465 = vld [vmem:[%s2 + $0x48] sm:$0xff]
        %v466 = vld [vmem:[%s2 + $0x50] sm:$0xff]
        %v467 = vld [vmem:[%s2 + $0x58] sm:$0xff]
        %v468 = vld [vmem:[%s2 + $0x60] sm:$0xff]
        %v469 = vld [vmem:[%s2 + $0x68] sm:$0xff]
        %v470 = vld [vmem:[%s2 + $0x70] sm:$0xff]
        %v471 = vld [vmem:[%s2 + $0x78] sm:$0xff]
        %v472 = vld [vmem:[%s3] sm:$0x1]
        %v474 = vlaneseq
        %v475 = vshrl.u32 %v474, 7
        %v476 = vsub.s32 0, %v475
        %v477 = vrot.slane %v472, %v476
        %479 = vmatprep.subr.mxu0 0.0
        %480 = vmatpush1.msra.mxu0 %v456
        %481 = vmatprep.subr.mxu0 0.0
        %482 = vmatpush1.msra.mxu0 %v457
        %483 = vmatprep.subr.mxu0 0.0
        %484 = vmatpush1.msra.mxu0 %v458
        %485 = vmatprep.subr.mxu0 0.0
        %486 = vmatpush1.msra.mxu0 %v459
        %487 = vmatprep.subr.mxu0 0.0
        %488 = vmatpush1.msra.mxu0 %v460
        %489 = vmatprep.subr.mxu0 0.0
        %490 = vmatpush1.msra.mxu0 %v461
        %491 = vmatprep.subr.mxu0 0.0
        %492 = vmatpush1.msra.mxu0 %v462
        %493 = vmatprep.subr.mxu0 0.0
        %494 = vmatpush1.msra.mxu0 %v463
        %495 = vmatprep.subr.mxu0 0.0
        %496 = vmatpush1.msra.mxu0 %v464
        %497 = vmatprep.subr.mxu0 0.0
        %498 = vmatpush1.msra.mxu0 %v465
        %499 = vmatprep.subr.mxu0 0.0
        %500 = vmatpush1.msra.mxu0 %v466
        %501 = vmatprep.subr.mxu0 0.0
        %502 = vmatpush1.msra.mxu0 %v467
        %503 = vmatprep.subr.mxu0 0.0
        %504 = vmatpush1.msra.mxu0 %v468
        %505 = vmatprep.subr.mxu0 0.0
        %506 = vmatpush1.msra.mxu0 %v469
        %507 = vmatprep.subr.mxu0 0.0
        %508 = vmatpush1.msra.mxu0 %v470
        %509 = vmatprep.subr.mxu0 0.0
        %510 = vmatpush1.msra.mxu0 %v471
        %511 = vmatprep.subr.mxu0 0.0
        %512 = vmatpush1.msra.mxu0 0.0
        %513 = vmatprep.subr.mxu0 0.0
        %514 = vmatpush1.msra.mxu0 0.0
        %515 = vmatprep.subr.mxu0 0.0
        %516 = vmatpush1.msra.mxu0 0.0
        %517 = vmatprep.subr.mxu0 0.0
        %518 = vmatpush1.msra.mxu0 0.0
        %519 = vmatprep.subr.mxu0 0.0
        %520 = vmatpush1.msra.mxu0 0.0
        %521 = vmatprep.subr.mxu0 0.0
        %522 = vmatpush1.msra.mxu0 0.0
        %523 = vmatprep.subr.mxu0 0.0
        %524 = vmatpush1.msra.mxu0 0.0
        %525 = vmatprep.subr.mxu0 0.0
        %526 = vmatpush1.msra.mxu0 0.0
        %527 = vmatprep.subr.mxu0 0.0
        %528 = vmatpush1.msra.mxu0 0.0
        %529 = vmatprep.subr.mxu0 0.0
        %530 = vmatpush1.msra.mxu0 0.0
        %531 = vmatprep.subr.mxu0 0.0
        %532 = vmatpush1.msra.mxu0 0.0
        %533 = vmatprep.subr.mxu0 0.0
        %534 = vmatpush1.msra.mxu0 0.0
        %535 = vmatprep.subr.mxu0 0.0
        %536 = vmatpush1.msra.mxu0 0.0
        %537 = vmatprep.subr.mxu0 0.0
        %538 = vmatpush1.msra.mxu0 0.0
        %539 = vmatprep.subr.mxu0 0.0
        %540 = vmatpush1.msra.mxu0 0.0
        %541 = vmatprep.subr.mxu0 0.0
        %542 = vmatpush1.msra.mxu0 0.0
        %543 = vmatprep.mubr.f32.mxu0 0.0
        %544 = vmatmul.mubr.f32.gmra.mrb[0].mxu0 %v447
        %v545 = vpop.f32.mrb[0].mxu0
        %v546 = vadd.f32 %v477, %v545
        %v547 = vpop.f32.mrb[0].mxu0
        %548 = vmatprep.mubr.f32.mxu0 0.0
        %549 = vmatmul.mubr.f32.gmra.mrb[0].mxu0 %v448
        %v550 = vpop.f32.mrb[0].mxu0
        %v551 = vadd.f32 %v477, %v550
        %v552 = vpop.f32.mrb[0].mxu0
        %553 = vmatprep.mubr.f32.mxu0 0.0
        %554 = vmatmul.mubr.f32.gmra.mrb[0].mxu0 %v449
        %v555 = vpop.f32.mrb[0].mxu0
        %v556 = vadd.f32 %v477, %v555
        %v557 = vpop.f32.mrb[0].mxu0
        %558 = vmatprep.mubr.f32.mxu0 0.0
        %559 = vmatmul.mubr.f32.gmra.mrb[0].mxu0 %v450
        %v560 = vpop.f32.mrb[0].mxu0
        %v561 = vadd.f32 %v477, %v560
        %v562 = vpop.f32.mrb[0].mxu0
        %563 = vmatprep.mubr.f32.mxu0 0.0
        %564 = vmatmul.mubr.f32.gmra.mrb[0].mxu0 %v451
        %v565 = vpop.f32.mrb[0].mxu0
        %v566 = vadd.f32 %v477, %v565
        %v567 = vpop.f32.mrb[0].mxu0
        %568 = vmatprep.mubr.f32.mxu0 0.0
        %569 = vmatmul.mubr.f32.gmra.mrb[0].mxu0 %v452
        %v570 = vpop.f32.mrb[0].mxu0
        %v571 = vadd.f32 %v477, %v570
        %v572 = vpop.f32.mrb[0].mxu0
        %573 = vmatprep.mubr.f32.mxu0 0.0
        %574 = vmatmul.mubr.f32.gmra.mrb[0].mxu0 %v453
        %v575 = vpop.f32.mrb[0].mxu0
        %v576 = vadd.f32 %v477, %v575
        %v577 = vpop.f32.mrb[0].mxu0
        %578 = vmatprep.mubr.f32.mxu0 0.0
        %579 = vmatmul.mubr.f32.gmra.mrb[0].mxu0 %v454
        %v580 = vpop.f32.mrb[0].mxu0
        %v581 = vadd.f32 %v477, %v580
        %v582 = vpop.f32.mrb[0].mxu0
        %583 = vdwg.mxu0
        %v584 = vld [vmem:[%s4] sm:$0xff]
        %v585 = vld [vmem:[%s4 + $0x8] sm:$0xff]
        %v586 = vld [vmem:[%s4 + $0x10] sm:$0xff]
        %v587 = vld [vmem:[%s4 + $0x18] sm:$0xff]
        %v588 = vld [vmem:[%s4 + $0x20] sm:$0xff]
        %v589 = vld [vmem:[%s4 + $0x28] sm:$0xff]
        %v590 = vld [vmem:[%s4 + $0x30] sm:$0xff]
        %v591 = vld [vmem:[%s4 + $0x38] sm:$0xff]
        %v592 = vld [vmem:[%s4 + $0x40] sm:$0xff]
        %v593 = vld [vmem:[%s4 + $0x48] sm:$0xff]
        %v594 = vld [vmem:[%s4 + $0x50] sm:$0xff]
        %v595 = vld [vmem:[%s4 + $0x58] sm:$0xff]
        %v596 = vld [vmem:[%s4 + $0x60] sm:$0xff]
        %v597 = vld [vmem:[%s4 + $0x68] sm:$0xff]
        %v598 = vld [vmem:[%s4 + $0x70] sm:$0xff]
        %v599 = vld [vmem:[%s4 + $0x78] sm:$0xff]
        %v600 = vld [vmem:[%s4 + $0x80] sm:$0xff]
        %v601 = vld [vmem:[%s4 + $0x88] sm:$0xff]
        %v602 = vld [vmem:[%s4 + $0x90] sm:$0xff]
        %v603 = vld [vmem:[%s4 + $0x98] sm:$0xff]
        %v604 = vld [vmem:[%s4 + $0xa0] sm:$0xff]
        %v605 = vld [vmem:[%s4 + $0xa8] sm:$0xff]
        %v606 = vld [vmem:[%s4 + $0xb0] sm:$0xff]
        %v607 = vld [vmem:[%s4 + $0xb8] sm:$0xff]
        %v608 = vld [vmem:[%s4 + $0xc0] sm:$0xff]
        %v609 = vld [vmem:[%s4 + $0xc8] sm:$0xff]
        %v610 = vld [vmem:[%s4 + $0xd0] sm:$0xff]
        %v611 = vld [vmem:[%s4 + $0xd8] sm:$0xff]
        %v612 = vld [vmem:[%s4 + $0xe0] sm:$0xff]
        %v613 = vld [vmem:[%s4 + $0xe8] sm:$0xff]
        %v614 = vld [vmem:[%s4 + $0xf0] sm:$0xff]
        %v615 = vld [vmem:[%s4 + $0xf8] sm:$0xff]
        %v616 = vld [vmem:[%s4 + $0x100] sm:$0xff]
        %v617 = vld [vmem:[%s4 + $0x108] sm:$0xff]
        %v618 = vld [vmem:[%s4 + $0x110] sm:$0xff]
        %v619 = vld [vmem:[%s4 + $0x118] sm:$0xff]
        %v620 = vld [vmem:[%s4 + $0x120] sm:$0xff]
        %v621 = vld [vmem:[%s4 + $0x128] sm:$0xff]
        %v622 = vld [vmem:[%s4 + $0x130] sm:$0xff]
        %v623 = vld [vmem:[%s4 + $0x138] sm:$0xff]
        %v624 = vld [vmem:[%s4 + $0x140] sm:$0xff]
        %v625 = vld [vmem:[%s4 + $0x148] sm:$0xff]
        %v626 = vld [vmem:[%s4 + $0x150] sm:$0xff]
        %v627 = vld [vmem:[%s4 + $0x158] sm:$0xff]
        %v628 = vld [vmem:[%s4 + $0x160] sm:$0xff]
        %v629 = vld [vmem:[%s4 + $0x168] sm:$0xff]
        %v630 = vld [vmem:[%s4 + $0x170] sm:$0xff]
        %v631 = vld [vmem:[%s4 + $0x178] sm:$0xff]
        %v632 = vld [vmem:[%s5] sm:$0x7]
        %v634 = vlaneseq
        %v635 = vshrl.u32 %v634, 7
        %v636 = vsub.s32 0, %v635
        %v637 = vrot.slane %v632, %v636
        %v638 = vlaneseq
        %v639 = vshrl.u32 %v638, 7
        %v640 = vsub.s32 1, %v639
        %v641 = vrot.slane %v632, %v640
        %v642 = vlaneseq
        %v643 = vshrl.u32 %v642, 7
        %v644 = vsub.s32 2, %v643
        %v645 = vrot.slane %v632, %v644
        %649 = vmatprep.subr.mxu0 %v585
        %650 = vmatpush1.msra.mxu0 %v584
        %651 = vmatprep.subr.mxu0 %v588
        %652 = vmatpush1.msra.mxu0 %v587
        %653 = vmatprep.subr.mxu0 %v591
        %654 = vmatpush1.msra.mxu0 %v590
        %655 = vmatprep.subr.mxu0 %v594
        %656 = vmatpush1.msra.mxu0 %v593
        %657 = vmatprep.subr.mxu0 %v597
        %658 = vmatpush1.msra.mxu0 %v596
        %659 = vmatprep.subr.mxu0 %v600
        %660 = vmatpush1.msra.mxu0 %v599
        %661 = vmatprep.subr.mxu0 %v603
        %662 = vmatpush1.msra.mxu0 %v602
        %663 = vmatprep.subr.mxu0 %v606
        %664 = vmatpush1.msra.mxu0 %v605
        %665 = vmatprep.subr.mxu0 %v609
        %666 = vmatpush1.msra.mxu0 %v608
        %667 = vmatprep.subr.mxu0 %v612
        %668 = vmatpush1.msra.mxu0 %v611
        %669 = vmatprep.subr.mxu0 %v615
        %670 = vmatpush1.msra.mxu0 %v614
        %671 = vmatprep.subr.mxu0 %v618
        %672 = vmatpush1.msra.mxu0 %v617
        %673 = vmatprep.subr.mxu0 %v621
        %674 = vmatpush1.msra.mxu0 %v620
        %675 = vmatprep.subr.mxu0 %v624
        %676 = vmatpush1.msra.mxu0 %v623
        %677 = vmatprep.subr.mxu0 %v627
        %678 = vmatpush1.msra.mxu0 %v626
        %679 = vmatprep.subr.mxu0 %v630
        %680 = vmatpush1.msra.mxu0 %v629
        %681 = vmatprep.subr.mxu0 0.0
        %682 = vmatpush1.msra.mxu0 0.0
        %683 = vmatprep.subr.mxu0 0.0
        %684 = vmatpush1.msra.mxu0 0.0
        %685 = vmatprep.subr.mxu0 0.0
        %686 = vmatpush1.msra.mxu0 0.0
        %687 = vmatprep.subr.mxu0 0.0
        %688 = vmatpush1.msra.mxu0 0.0
        %689 = vmatprep.subr.mxu0 0.0
        %690 = vmatpush1.msra.mxu0 0.0
        %691 = vmatprep.subr.mxu0 0.0
        %692 = vmatpush1.msra.mxu0 0.0
        %693 = vmatprep.subr.mxu0 0.0
        %694 = vmatpush1.msra.mxu0 0.0
        %695 = vmatprep.subr.mxu0 0.0
        %696 = vmatpush1.msra.mxu0 0.0
        %697 = vmatprep.subr.mxu0 0.0
        %698 = vmatpush1.msra.mxu0 0.0
        %699 = vmatprep.subr.mxu0 0.0
        %700 = vmatpush1.msra.mxu0 0.0
        %701 = vmatprep.subr.mxu0 0.0
        %702 = vmatpush1.msra.mxu0 0.0
        %703 = vmatprep.subr.mxu0 0.0
        %704 = vmatpush1.msra.mxu0 0.0
        %705 = vmatprep.subr.mxu0 0.0
        %706 = vmatpush1.msra.mxu0 0.0
        %707 = vmatprep.subr.mxu0 0.0
        %708 = vmatpush1.msra.mxu0 0.0
        %709 = vmatprep.subr.mxu0 0.0
        %710 = vmatpush1.msra.mxu0 0.0
        %711 = vmatprep.subr.mxu0 0.0
        %712 = vmatpush1.msra.mxu0 0.0
        %713 = vmatprep.mubr.f32.mxu0 0.0
        %714 = vmatmul.mubr.f32.gmra.mrb[0].mxu0 %v455
        %v715 = vpop.f32.mrb[0].mxu0
        %v716 = vadd.f32 %v637, %v715
        %v717 = vpop.f32.mrb[0].mxu0
        %v718 = vadd.f32 %v641, %v717
        %719 = vdwg.mxu0
        %720 = vmatprep.subr.mxu0 0.0
        %721 = vmatpush1.msra.mxu0 %v586
        %722 = vmatprep.subr.mxu0 0.0
        %723 = vmatpush1.msra.mxu0 %v589
        %724 = vmatprep.subr.mxu0 0.0
        %725 = vmatpush1.msra.mxu0 %v592
        %726 = vmatprep.subr.mxu0 0.0
        %727 = vmatpush1.msra.mxu0 %v595
        %728 = vmatprep.subr.mxu0 0.0
        %729 = vmatpush1.msra.mxu0 %v598
        %730 = vmatprep.subr.mxu0 0.0
        %731 = vmatpush1.msra.mxu0 %v601
        %732 = vmatprep.subr.mxu0 0.0
        %733 = vmatpush1.msra.mxu0 %v604
        %734 = vmatprep.subr.mxu0 0.0
        %735 = vmatpush1.msra.mxu0 %v607
        %736 = vmatprep.subr.mxu0 0.0
        %737 = vmatpush1.msra.mxu0 %v610
        %738 = vmatprep.subr.mxu0 0.0
        %739 = vmatpush1.msra.mxu0 %v613
        %740 = vmatprep.subr.mxu0 0.0
        %741 = vmatpush1.msra.mxu0 %v616
        %742 = vmatprep.subr.mxu0 0.0
        %743 = vmatpush1.msra.mxu0 %v619
        %744 = vmatprep.subr.mxu0 0.0
        %745 = vmatpush1.msra.mxu0 %v622
        %746 = vmatprep.subr.mxu0 0.0
        %747 = vmatpush1.msra.mxu0 %v625
        %748 = vmatprep.subr.mxu0 0.0
        %749 = vmatpush1.msra.mxu0 %v628
        %750 = vmatprep.subr.mxu0 0.0
        %751 = vmatpush1.msra.mxu0 %v631
        %752 = vmatprep.subr.mxu0 0.0
        %753 = vmatpush1.msra.mxu0 0.0
        %754 = vmatprep.subr.mxu0 0.0
        %755 = vmatpush1.msra.mxu0 0.0
        %756 = vmatprep.subr.mxu0 0.0
        %757 = vmatpush1.msra.mxu0 0.0
        %758 = vmatprep.subr.mxu0 0.0
        %759 = vmatpush1.msra.mxu0 0.0
        %760 = vmatprep.subr.mxu0 0.0
        %761 = vmatpush1.msra.mxu0 0.0
        %762 = vmatprep.subr.mxu0 0.0
        %763 = vmatpush1.msra.mxu0 0.0
        %764 = vmatprep.subr.mxu0 0.0
        %765 = vmatpush1.msra.mxu0 0.0
        %766 = vmatprep.subr.mxu0 0.0
        %767 = vmatpush1.msra.mxu0 0.0
        %768 = vmatprep.subr.mxu0 0.0
        %769 = vmatpush1.msra.mxu0 0.0
        %770 = vmatprep.subr.mxu0 0.0
        %771 = vmatpush1.msra.mxu0 0.0
        %772 = vmatprep.subr.mxu0 0.0
        %773 = vmatpush1.msra.mxu0 0.0
        %774 = vmatprep.subr.mxu0 0.0
        %775 = vmatpush1.msra.mxu0 0.0
        %776 = vmatprep.subr.mxu0 0.0
        %777 = vmatpush1.msra.mxu0 0.0
        %778 = vmatprep.subr.mxu0 0.0
        %779 = vmatpush1.msra.mxu0 0.0
        %780 = vmatprep.subr.mxu0 0.0
        %781 = vmatpush1.msra.mxu0 0.0
        %782 = vmatprep.subr.mxu0 0.0
        %783 = vmatpush1.msra.mxu0 0.0
        %784 = vmatprep.mubr.f32.mxu0 0.0
        %785 = vmatmul.mubr.f32.gmra.mrb[0].mxu0 %v455
        %v786 = vpop.f32.mrb[0].mxu0
        %v787 = vadd.f32 %v645, %v786
        %v788 = vpop.f32.mrb[0].mxu0
        %789 = vdwg.mxu0
        %vm790 = vcmask 523264
        %v792 = vsel %vm790, %v546, 0
        %v795 = vsel %vm790, %v551, 0
        %v798 = vsel %vm790, %v556, 0
        %v801 = vsel %vm790, %v561, 0
        %v804 = vsel %vm790, %v566, 0
        %v807 = vsel %vm790, %v571, 0
        %v810 = vsel %vm790, %v576, 0
        %v813 = vsel %vm790, %v581, 0
        %v816 = vsel %vm790, %v716, 0
        %818 = vmatprep.subr.mxu0 0.0
        %819 = vmatpush1.xpose.msra.mxu0 %v816
        %820 = vmatprep.subr.mxu0 0.0
        %821 = vmatpush1.xpose.msra.mxu0 0.0
        %822 = vmatprep.subr.mxu0 0.0
        %823 = vmatpush1.xpose.msra.mxu0 0.0
        %824 = vmatprep.subr.mxu0 0.0
        %825 = vmatpush1.xpose.msra.mxu0 0.0
        %826 = vmatprep.subr.mxu0 0.0
        %827 = vmatpush1.xpose.msra.mxu0 0.0
        %828 = vmatprep.subr.mxu0 0.0
        %829 = vmatpush1.xpose.msra.mxu0 0.0
        %830 = vmatprep.subr.mxu0 0.0
        %831 = vmatpush1.xpose.msra.mxu0 0.0
        %832 = vmatprep.subr.mxu0 0.0
        %833 = vmatpush1.xpose.msra.mxu0 0.0
        %834 = vmatprep.subr.mxu0 0.0
        %835 = vmatpush1.xpose.msra.mxu0 0.0
        %836 = vmatprep.subr.mxu0 0.0
        %837 = vmatpush1.xpose.msra.mxu0 0.0
        %838 = vmatprep.subr.mxu0 0.0
        %839 = vmatpush1.xpose.msra.mxu0 0.0
        %840 = vmatprep.subr.mxu0 0.0
        %841 = vmatpush1.xpose.msra.mxu0 0.0
        %842 = vmatprep.subr.mxu0 0.0
        %843 = vmatpush1.xpose.msra.mxu0 0.0
        %844 = vmatprep.subr.mxu0 0.0
        %845 = vmatpush1.xpose.msra.mxu0 0.0
        %846 = vmatprep.subr.mxu0 0.0
        %847 = vmatpush1.xpose.msra.mxu0 0.0
        %848 = vmatprep.subr.mxu0 0.0
        %849 = vmatpush1.xpose.msra.mxu0 0.0
        %850 = vmatprep.subr.mxu0 0.0
        %851 = vmatpush1.xpose.msra.mxu0 0.0
        %852 = vmatprep.subr.mxu0 0.0
        %853 = vmatpush1.xpose.msra.mxu0 0.0
        %854 = vmatprep.subr.mxu0 0.0
        %855 = vmatpush1.xpose.msra.mxu0 0.0
        %856 = vmatprep.subr.mxu0 0.0
        %857 = vmatpush1.xpose.msra.mxu0 0.0
        %858 = vmatprep.subr.mxu0 0.0
        %859 = vmatpush1.xpose.msra.mxu0 0.0
        %860 = vmatprep.subr.mxu0 0.0
        %861 = vmatpush1.xpose.msra.mxu0 0.0
        %862 = vmatprep.subr.mxu0 0.0
        %863 = vmatpush1.xpose.msra.mxu0 0.0
        %864 = vmatprep.subr.mxu0 0.0
        %865 = vmatpush1.xpose.msra.mxu0 0.0
        %866 = vmatprep.subr.mxu0 0.0
        %867 = vmatpush1.xpose.msra.mxu0 0.0
        %868 = vmatprep.subr.mxu0 0.0
        %869 = vmatpush1.xpose.msra.mxu0 0.0
        %870 = vmatprep.subr.mxu0 0.0
        %871 = vmatpush1.xpose.msra.mxu0 0.0
        %872 = vmatprep.subr.mxu0 0.0
        %873 = vmatpush1.xpose.msra.mxu0 0.0
        %874 = vmatprep.subr.mxu0 0.0
        %875 = vmatpush1.xpose.msra.mxu0 0.0
        %876 = vmatprep.subr.mxu0 0.0
        %877 = vmatpush1.xpose.msra.mxu0 0.0
        %878 = vmatprep.subr.mxu0 0.0
        %879 = vmatpush1.xpose.msra.mxu0 0.0
        %880 = vmatprep.subr.mxu0 0.0
        %881 = vmatpush1.xpose.msra.mxu0 0.0
        %882 = vmatprep.mubr.f32.mxu0 0.0
        %883 = vmatmul.mubr.f32.gmra.mrb[0].mxu0 %v792
        %v884 = vpop.f32.mrb[0].mxu0
        %v885 = vadd.f32 0.0, %v884
        %v886 = vpop.f32.mrb[0].mxu0
        %887 = vmatprep.mubr.f32.mxu0 0.0
        %888 = vmatmul.mubr.f32.gmra.mrb[0].mxu0 %v795
        %v889 = vpop.f32.mrb[0].mxu0
        %v890 = vadd.f32 0.0, %v889
        %v891 = vpop.f32.mrb[0].mxu0
        %892 = vmatprep.mubr.f32.mxu0 0.0
        %893 = vmatmul.mubr.f32.gmra.mrb[0].mxu0 %v798
        %v894 = vpop.f32.mrb[0].mxu0
        %v895 = vadd.f32 0.0, %v894
        %v896 = vpop.f32.mrb[0].mxu0
        %897 = vmatprep.mubr.f32.mxu0 0.0
        %898 = vmatmul.mubr.f32.gmra.mrb[0].mxu0 %v801
        %v899 = vpop.f32.mrb[0].mxu0
        %v900 = vadd.f32 0.0, %v899
        %v901 = vpop.f32.mrb[0].mxu0
        %902 = vmatprep.mubr.f32.mxu0 0.0
        %903 = vmatmul.mubr.f32.gmra.mrb[0].mxu0 %v804
        %v904 = vpop.f32.mrb[0].mxu0
        %v905 = vadd.f32 0.0, %v904
        %v906 = vpop.f32.mrb[0].mxu0
        %907 = vmatprep.mubr.f32.mxu0 0.0
        %908 = vmatmul.mubr.f32.gmra.mrb[0].mxu0 %v807
        %v909 = vpop.f32.mrb[0].mxu0
        %v910 = vadd.f32 0.0, %v909
        %v911 = vpop.f32.mrb[0].mxu0
        %912 = vmatprep.mubr.f32.mxu0 0.0
        %913 = vmatmul.mubr.f32.gmra.mrb[0].mxu0 %v810
        %v914 = vpop.f32.mrb[0].mxu0
        %v915 = vadd.f32 0.0, %v914
        %v916 = vpop.f32.mrb[0].mxu0
        %917 = vmatprep.mubr.f32.mxu0 0.0
        %918 = vmatmul.mubr.f32.gmra.mrb[0].mxu0 %v813
        %v919 = vpop.f32.mrb[0].mxu0
        %v920 = vadd.f32 0.0, %v919
        %v921 = vpop.f32.mrb[0].mxu0
        %922 = vdwg.mxu0
        %v923 = vmul.f32 %v885, 0.125
        %v924 = vmul.f32 %v890, 0.125
        %v925 = vmul.f32 %v895, 0.125
        %v926 = vmul.f32 %v900, 0.125
        %v927 = vmul.f32 %v905, 0.125
        %v928 = vmul.f32 %v910, 0.125
        %v929 = vmul.f32 %v915, 0.125
        %v930 = vmul.f32 %v920, 0.125
        %vm931 = vcmask 64512
        %v932 = vsel %vm931, %v923, -inf
        %933 = vmax.xlane.f32.xlu0 %v932
        %v934 = vpop.xlane.xlu0 %933
        %v935 = vsel %vm931, %v924, -inf
        %936 = vmax.xlane.f32.xlu0 %v935
        %v937 = vpop.xlane.xlu0 %936
        %v938 = vsel %vm931, %v925, -inf
        %939 = vmax.xlane.f32.xlu0 %v938
        %v940 = vpop.xlane.xlu0 %939
        %v941 = vsel %vm931, %v926, -inf
        %942 = vmax.xlane.f32.xlu0 %v941
        %v943 = vpop.xlane.xlu0 %942
        %v944 = vsel %vm931, %v927, -inf
        %945 = vmax.xlane.f32.xlu0 %v944
        %v946 = vpop.xlane.xlu0 %945
        %v947 = vsel %vm931, %v928, -inf
        %948 = vmax.xlane.f32.xlu0 %v947
        %v949 = vpop.xlane.xlu0 %948
        %v950 = vsel %vm931, %v929, -inf
        %951 = vmax.xlane.f32.xlu0 %v950
        %v952 = vpop.xlane.xlu0 %951
        %v953 = vsel %vm931, %v930, -inf
        %954 = vmax.xlane.f32.xlu0 %v953
        %v955 = vpop.xlane.xlu0 %954
        %v956 = vsub.f32 %v923, %v934
        %v957 = vsub.f32 %v924, %v937
        %v958 = vsub.f32 %v925, %v940
        %v959 = vsub.f32 %v926, %v943
        %v960 = vsub.f32 %v927, %v946
        %v961 = vsub.f32 %v928, %v949
        %v962 = vsub.f32 %v929, %v952
        %v963 = vsub.f32 %v930, %v955
        %v964 = vmul.f32 %v956, 1.442695
        %v965 = vpow.pop %v964
        %v966 = vmul.f32 %v957, 1.442695
        %v967 = vpow.pop %v966
        %v968 = vmul.f32 %v958, 1.442695
        %v969 = vpow.pop %v968
        %v970 = vmul.f32 %v959, 1.442695
        %v971 = vpow.pop %v970
        %v972 = vmul.f32 %v960, 1.442695
        %v973 = vpow.pop %v972
        %v974 = vmul.f32 %v961, 1.442695
        %v975 = vpow.pop %v974
        %v976 = vmul.f32 %v962, 1.442695
        %v977 = vpow.pop %v976
        %v978 = vmul.f32 %v963, 1.442695
        %v979 = vpow.pop %v978
        %v980 = vsel %vm931, %v965, 0.0
        %981 = vadd.xlane.f32.xlu0 %v980
        %v982 = vpop.xlane.xlu0 %981
        %v983 = vsel %vm931, %v967, 0.0
        %984 = vadd.xlane.f32.xlu0 %v983
        %v985 = vpop.xlane.xlu0 %984
        %v986 = vsel %vm931, %v969, 0.0
        %987 = vadd.xlane.f32.xlu0 %v986
        %v988 = vpop.xlane.xlu0 %987
        %v989 = vsel %vm931, %v971, 0.0
        %990 = vadd.xlane.f32.xlu0 %v989
        %v991 = vpop.xlane.xlu0 %990
        %v992 = vsel %vm931, %v973, 0.0
        %993 = vadd.xlane.f32.xlu0 %v992
        %v994 = vpop.xlane.xlu0 %993
        %v995 = vsel %vm931, %v975, 0.0
        %996 = vadd.xlane.f32.xlu0 %v995
        %v997 = vpop.xlane.xlu0 %996
        %v998 = vsel %vm931, %v977, 0.0
        %999 = vadd.xlane.f32.xlu0 %v998
        %v1000 = vpop.xlane.xlu0 %999
        %v1001 = vsel %vm931, %v979, 0.0
        %1002 = vadd.xlane.f32.xlu0 %v1001
        %v1003 = vpop.xlane.xlu0 %1002
        %v1004 = vrcp.pop %v982
        %v1005 = vrcp.pop %v985
        %v1006 = vrcp.pop %v988
        %v1007 = vrcp.pop %v991
        %v1008 = vrcp.pop %v994
        %v1009 = vrcp.pop %v997
        %v1010 = vrcp.pop %v1000
        %v1011 = vrcp.pop %v1003
        %v1012 = vmul.f32 %v965, %v1004
        %v1013 = vmul.f32 %v967, %v1005
        %v1014 = vmul.f32 %v969, %v1006
        %v1015 = vmul.f32 %v971, %v1007
        %v1016 = vmul.f32 %v973, %v1008
        %v1017 = vmul.f32 %v975, %v1009
        %v1018 = vmul.f32 %v977, %v1010
        %v1019 = vmul.f32 %v979, %v1011
        %1022 = vrot.lane.b32.xlu0 %v716, 64
        %v1023 = vpop.permute.xlu0 %1022
        %1024 = vrot.lane.b32.xlu0 %v718, 64
        %v1025 = vpop.permute.xlu0 %1024
        %1026 = vrot.lane.b32.xlu0 %v787, 64
        %v1027 = vpop.permute.xlu0 %1026
        %v1028 = vsel %vm790, %v1023, %v1025
        %v1029 = vsel %vm790, %v1025, %v1027
        %v1033 = vsel %vm931, %v1012, 0
        %v1036 = vsel %vm931, %v1013, 0
        %v1039 = vsel %vm931, %v1014, 0
        %v1042 = vsel %vm931, %v1015, 0
        %v1045 = vsel %vm931, %v1016, 0
        %v1048 = vsel %vm931, %v1017, 0
        %v1051 = vsel %vm931, %v1018, 0
        %v1054 = vsel %vm931, %v1019, 0
        %1056 = vmatprep.subr.mxu0 %v1029
        %1057 = vmatpush1.msra.mxu0 %v1028
        %1058 = vmatprep.subr.mxu0 0.0
        %1059 = vmatpush1.msra.mxu0 0.0
        %1060 = vmatprep.subr.mxu0 0.0
        %1061 = vmatpush1.msra.mxu0 0.0
        %1062 = vmatprep.subr.mxu0 0.0
        %1063 = vmatpush1.msra.mxu0 0.0
        %1064 = vmatprep.subr.mxu0 0.0
        %1065 = vmatpush1.msra.mxu0 0.0
        %1066 = vmatprep.subr.mxu0 0.0
        %1067 = vmatpush1.msra.mxu0 0.0
        %1068 = vmatprep.subr.mxu0 0.0
        %1069 = vmatpush1.msra.mxu0 0.0
        %1070 = vmatprep.subr.mxu0 0.0
        %1071 = vmatpush1.msra.mxu0 0.0
        %1072 = vmatprep.subr.mxu0 0.0
        %1073 = vmatpush1.msra.mxu0 0.0
        %1074 = vmatprep.subr.mxu0 0.0
        %1075 = vmatpush1.msra.mxu0 0.0
        %1076 = vmatprep.subr.mxu0 0.0
        %1077 = vmatpush1.msra.mxu0 0.0
        %1078 = vmatprep.subr.mxu0 0.0
        %1079 = vmatpush1.msra.mxu0 0.0
        %1080 = vmatprep.subr.mxu0 0.0
        %1081 = vmatpush1.msra.mxu0 0.0
        %1082 = vmatprep.subr.mxu0 0.0
        %1083 = vmatpush1.msra.mxu0 0.0
        %1084 = vmatprep.subr.mxu0 0.0
        %1085 = vmatpush1.msra.mxu0 0.0
        %1086 = vmatprep.subr.mxu0 0.0
        %1087 = vmatpush1.msra.mxu0 0.0
        %1088 = vmatprep.subr.mxu0 0.0
        %1089 = vmatpush1.msra.mxu0 0.0
        %1090 = vmatprep.subr.mxu0 0.0
        %1091 = vmatpush1.msra.mxu0 0.0
        %1092 = vmatprep.subr.mxu0 0.0
        %1093 = vmatpush1.msra.mxu0 0.0
        %1094 = vmatprep.subr.mxu0 0.0
        %1095 = vmatpush1.msra.mxu0 0.0
        %1096 = vmatprep.subr.mxu0 0.0
        %1097 = vmatpush1.msra.mxu0 0.0
        %1098 = vmatprep.subr.mxu0 0.0
        %1099 = vmatpush1.msra.mxu0 0.0
        %1100 = vmatprep.subr.mxu0 0.0
        %1101 = vmatpush1.msra.mxu0 0.0
        %1102 = vmatprep.subr.mxu0 0.0
        %1103 = vmatpush1.msra.mxu0 0.0
        %1104 = vmatprep.subr.mxu0 0.0
        %1105 = vmatpush1.msra.mxu0 0.0
        %1106 = vmatprep.subr.mxu0 0.0
        %1107 = vmatpush1.msra.mxu0 0.0
        %1108 = vmatprep.subr.mxu0 0.0
        %1109 = vmatpush1.msra.mxu0 0.0
        %1110 = vmatprep.subr.mxu0 0.0
        %1111 = vmatpush1.msra.mxu0 0.0
        %1112 = vmatprep.subr.mxu0 0.0
        %1113 = vmatpush1.msra.mxu0 0.0
        %1114 = vmatprep.subr.mxu0 0.0
        %1115 = vmatpush1.msra.mxu0 0.0
        %1116 = vmatprep.subr.mxu0 0.0
        %1117 = vmatpush1.msra.mxu0 0.0
        %1118 = vmatprep.subr.mxu0 0.0
        %1119 = vmatpush1.msra.mxu0 0.0
        %1120 = vmatprep.mubr.f32.mxu0 0.0
        %1121 = vmatmul.mubr.f32.gmra.mrb[0].mxu0 %v1033
        %v1122 = vpop.f32.mrb[0].mxu0
        %v1123 = vadd.f32 0.0, %v1122
        %v1124 = vpop.f32.mrb[0].mxu0
        %v1125 = vadd.f32 0.0, %v1124
        %1126 = vmatprep.mubr.f32.mxu0 0.0
        %1127 = vmatmul.mubr.f32.gmra.mrb[0].mxu0 %v1036
        %v1128 = vpop.f32.mrb[0].mxu0
        %v1129 = vadd.f32 0.0, %v1128
        %v1130 = vpop.f32.mrb[0].mxu0
        %v1131 = vadd.f32 0.0, %v1130
        %1132 = vmatprep.mubr.f32.mxu0 0.0
        %1133 = vmatmul.mubr.f32.gmra.mrb[0].mxu0 %v1039
        %v1134 = vpop.f32.mrb[0].mxu0
        %v1135 = vadd.f32 0.0, %v1134
        %v1136 = vpop.f32.mrb[0].mxu0
        %v1137 = vadd.f32 0.0, %v1136
        %1138 = vmatprep.mubr.f32.mxu0 0.0
        %1139 = vmatmul.mubr.f32.gmra.mrb[0].mxu0 %v1042
        %v1140 = vpop.f32.mrb[0].mxu0
        %v1141 = vadd.f32 0.0, %v1140
        %v1142 = vpop.f32.mrb[0].mxu0
        %v1143 = vadd.f32 0.0, %v1142
        %1144 = vmatprep.mubr.f32.mxu0 0.0
        %1145 = vmatmul.mubr.f32.gmra.mrb[0].mxu0 %v1045
        %v1146 = vpop.f32.mrb[0].mxu0
        %v1147 = vadd.f32 0.0, %v1146
        %v1148 = vpop.f32.mrb[0].mxu0
        %v1149 = vadd.f32 0.0, %v1148
        %1150 = vmatprep.mubr.f32.mxu0 0.0
        %1151 = vmatmul.mubr.f32.gmra.mrb[0].mxu0 %v1048
        %v1152 = vpop.f32.mrb[0].mxu0
        %v1153 = vadd.f32 0.0, %v1152
        %v1154 = vpop.f32.mrb[0].mxu0
        %v1155 = vadd.f32 0.0, %v1154
        %1156 = vmatprep.mubr.f32.mxu0 0.0
        %1157 = vmatmul.mubr.f32.gmra.mrb[0].mxu0 %v1051
        %v1158 = vpop.f32.mrb[0].mxu0
        %v1159 = vadd.f32 0.0, %v1158
        %v1160 = vpop.f32.mrb[0].mxu0
        %v1161 = vadd.f32 0.0, %v1160
        %1162 = vmatprep.mubr.f32.mxu0 0.0
        %1163 = vmatmul.mubr.f32.gmra.mrb[0].mxu0 %v1054
        %v1164 = vpop.f32.mrb[0].mxu0
        %v1165 = vadd.f32 0.0, %v1164
        %v1166 = vpop.f32.mrb[0].mxu0
        %v1167 = vadd.f32 0.0, %v1166
        %1168 = vdwg.mxu0
        %v1169 = vld [vmem:[%s6] sm:$0xff]
        %v1170 = vld [vmem:[%s6 + $0x8] sm:$0xff]
        %v1171 = vld [vmem:[%s6 + $0x10] sm:$0xff]
        %v1172 = vld [vmem:[%s6 + $0x18] sm:$0xff]
        %v1173 = vld [vmem:[%s6 + $0x20] sm:$0xff]
        %v1174 = vld [vmem:[%s6 + $0x28] sm:$0xff]
        %v1175 = vld [vmem:[%s6 + $0x30] sm:$0xff]
        %v1176 = vld [vmem:[%s6 + $0x38] sm:$0xff]
        %v1177 = vld [vmem:[%s6 + $0x40] sm:$0xff]
        %v1178 = vld [vmem:[%s6 + $0x48] sm:$0xff]
        %v1179 = vld [vmem:[%s6 + $0x50] sm:$0xff]
        %v1180 = vld [vmem:[%s6 + $0x58] sm:$0xff]
        %v1181 = vld [vmem:[%s6 + $0x60] sm:$0xff]
        %v1182 = vld [vmem:[%s6 + $0x68] sm:$0xff]
        %v1183 = vld [vmem:[%s6 + $0x70] sm:$0xff]
        %v1184 = vld [vmem:[%s6 + $0x78] sm:$0xff]
        %v1185 = vld [vmem:[%s6 + $0x80] sm:$0xff]
        %v1186 = vld [vmem:[%s6 + $0x88] sm:$0xff]
        %v1187 = vld [vmem:[%s6 + $0x90] sm:$0xff]
        %v1188 = vld [vmem:[%s6 + $0x98] sm:$0xff]
        %v1189 = vld [vmem:[%s6 + $0xa0] sm:$0xff]
        %v1190 = vld [vmem:[%s6 + $0xa8] sm:$0xff]
        %v1191 = vld [vmem:[%s6 + $0xb0] sm:$0xff]
        %v1192 = vld [vmem:[%s6 + $0xb8] sm:$0xff]
        %v1193 = vld [vmem:[%s6 + $0xc0] sm:$0xff]
        %v1194 = vld [vmem:[%s6 + $0xc8] sm:$0xff]
        %v1195 = vld [vmem:[%s6 + $0xd0] sm:$0xff]
        %v1196 = vld [vmem:[%s6 + $0xd8] sm:$0xff]
        %v1197 = vld [vmem:[%s6 + $0xe0] sm:$0xff]
        %v1198 = vld [vmem:[%s6 + $0xe8] sm:$0xff]
        %v1199 = vld [vmem:[%s6 + $0xf0] sm:$0xff]
        %v1200 = vld [vmem:[%s6 + $0xf8] sm:$0xff]
        %v1201 = vld [vmem:[%s7] sm:$0x1]
        %v1203 = vlaneseq
        %v1204 = vshrl.u32 %v1203, 7
        %v1205 = vsub.s32 0, %v1204
        %v1206 = vrot.slane %v1201, %v1205
        %1208 = vmatprep.subr.mxu0 0.0
        %1209 = vmatpush1.msra.mxu0 %v1169
        %1210 = vmatprep.subr.mxu0 0.0
        %1211 = vmatpush1.msra.mxu0 %v1170
        %1212 = vmatprep.subr.mxu0 0.0
        %1213 = vmatpush1.msra.mxu0 %v1171
        %1214 = vmatprep.subr.mxu0 0.0
        %1215 = vmatpush1.msra.mxu0 %v1172
        %1216 = vmatprep.subr.mxu0 0.0
        %1217 = vmatpush1.msra.mxu0 %v1173
        %1218 = vmatprep.subr.mxu0 0.0
        %1219 = vmatpush1.msra.mxu0 %v1174
        %1220 = vmatprep.subr.mxu0 0.0
        %1221 = vmatpush1.msra.mxu0 %v1175
        %1222 = vmatprep.subr.mxu0 0.0
        %1223 = vmatpush1.msra.mxu0 %v1176
        %1224 = vmatprep.subr.mxu0 0.0
        %1225 = vmatpush1.msra.mxu0 %v1177
        %1226 = vmatprep.subr.mxu0 0.0
        %1227 = vmatpush1.msra.mxu0 %v1178
        %1228 = vmatprep.subr.mxu0 0.0
        %1229 = vmatpush1.msra.mxu0 %v1179
        %1230 = vmatprep.subr.mxu0 0.0
        %1231 = vmatpush1.msra.mxu0 %v1180
        %1232 = vmatprep.subr.mxu0 0.0
        %1233 = vmatpush1.msra.mxu0 %v1181
        %1234 = vmatprep.subr.mxu0 0.0
        %1235 = vmatpush1.msra.mxu0 %v1182
        %1236 = vmatprep.subr.mxu0 0.0
        %1237 = vmatpush1.msra.mxu0 %v1183
        %1238 = vmatprep.subr.mxu0 0.0
        %1239 = vmatpush1.msra.mxu0 %v1184
        %1240 = vmatprep.subr.mxu0 0.0
        %1241 = vmatpush1.msra.mxu0 %v1185
        %1242 = vmatprep.subr.mxu0 0.0
        %1243 = vmatpush1.msra.mxu0 %v1186
        %1244 = vmatprep.subr.mxu0 0.0
        %1245 = vmatpush1.msra.mxu0 %v1187
        %1246 = vmatprep.subr.mxu0 0.0
        %1247 = vmatpush1.msra.mxu0 %v1188
        %1248 = vmatprep.subr.mxu0 0.0
        %1249 = vmatpush1.msra.mxu0 %v1189
        %1250 = vmatprep.subr.mxu0 0.0
        %1251 = vmatpush1.msra.mxu0 %v1190
        %1252 = vmatprep.subr.mxu0 0.0
        %1253 = vmatpush1.msra.mxu0 %v1191
        %1254 = vmatprep.subr.mxu0 0.0
        %1255 = vmatpush1.msra.mxu0 %v1192
        %1256 = vmatprep.subr.mxu0 0.0
        %1257 = vmatpush1.msra.mxu0 %v1193
        %1258 = vmatprep.subr.mxu0 0.0
        %1259 = vmatpush1.msra.mxu0 %v1194
        %1260 = vmatprep.subr.mxu0 0.0
        %1261 = vmatpush1.msra.mxu0 %v1195
        %1262 = vmatprep.subr.mxu0 0.0
        %1263 = vmatpush1.msra.mxu0 %v1196
        %1264 = vmatprep.subr.mxu0 0.0
        %1265 = vmatpush1.msra.mxu0 %v1197
        %1266 = vmatprep.subr.mxu0 0.0
        %1267 = vmatpush1.msra.mxu0 %v1198
        %1268 = vmatprep.subr.mxu0 0.0
        %1269 = vmatpush1.msra.mxu0 %v1199
        %1270 = vmatprep.subr.mxu0 0.0
        %1271 = vmatpush1.msra.mxu0 %v1200
        %1272 = vmatprep.mubr.f32.mxu0 %v1125
        %1273 = vmatmul.mubr.f32.gmra.mrb[0].mxu0 %v1123
        %v1274 = vpop.f32.mrb[0].mxu0
        %v1275 = vadd.f32 %v1206, %v1274
        %v1276 = vpop.f32.mrb[0].mxu0
        %1277 = vmatprep.mubr.f32.mxu0 %v1131
        %1278 = vmatmul.mubr.f32.gmra.mrb[0].mxu0 %v1129
        %v1279 = vpop.f32.mrb[0].mxu0
        %v1280 = vadd.f32 %v1206, %v1279
        %v1281 = vpop.f32.mrb[0].mxu0
        %1282 = vmatprep.mubr.f32.mxu0 %v1137
        %1283 = vmatmul.mubr.f32.gmra.mrb[0].mxu0 %v1135
        %v1284 = vpop.f32.mrb[0].mxu0
        %v1285 = vadd.f32 %v1206, %v1284
        %v1286 = vpop.f32.mrb[0].mxu0
        %1287 = vmatprep.mubr.f32.mxu0 %v1143
        %1288 = vmatmul.mubr.f32.gmra.mrb[0].mxu0 %v1141
        %v1289 = vpop.f32.mrb[0].mxu0
        %v1290 = vadd.f32 %v1206, %v1289
        %v1291 = vpop.f32.mrb[0].mxu0
        %1292 = vmatprep.mubr.f32.mxu0 %v1149
        %1293 = vmatmul.mubr.f32.gmra.mrb[0].mxu0 %v1147
        %v1294 = vpop.f32.mrb[0].mxu0
        %v1295 = vadd.f32 %v1206, %v1294
        %v1296 = vpop.f32.mrb[0].mxu0
        %1297 = vmatprep.mubr.f32.mxu0 %v1155
        %1298 = vmatmul.mubr.f32.gmra.mrb[0].mxu0 %v1153
        %v1299 = vpop.f32.mrb[0].mxu0
        %v1300 = vadd.f32 %v1206, %v1299
        %v1301 = vpop.f32.mrb[0].mxu0
        %1302 = vmatprep.mubr.f32.mxu0 %v1161
        %1303 = vmatmul.mubr.f32.gmra.mrb[0].mxu0 %v1159
        %v1304 = vpop.f32.mrb[0].mxu0
        %v1305 = vadd.f32 %v1206, %v1304
        %v1306 = vpop.f32.mrb[0].mxu0
        %1307 = vmatprep.mubr.f32.mxu0 %v1167
        %1308 = vmatmul.mubr.f32.gmra.mrb[0].mxu0 %v1165
        %v1309 = vpop.f32.mrb[0].mxu0
        %v1310 = vadd.f32 %v1206, %v1309
        %v1311 = vpop.f32.mrb[0].mxu0
        %1312 = vdwg.mxu0
        %v1313 = vadd.f32 %v1275, %v447
        %v1314 = vadd.f32 %v1280, %v448
        %v1315 = vadd.f32 %v1285, %v449
        %v1316 = vadd.f32 %v1290, %v450
        %v1317 = vadd.f32 %v1295, %v451
        %v1318 = vadd.f32 %v1300, %v452
        %v1319 = vadd.f32 %v1305, %v453
        %v1320 = vadd.f32 %v1310, %v454
        %1321 = vst [vmem:[%s423] sm:$0xff] %v1313
        %1322 = vst [vmem:[%s423 + $0x8] sm:$0xff] %v1314
        %1323 = vst [vmem:[%s423 + $0x10] sm:$0xff] %v1315
        %1324 = vst [vmem:[%s423 + $0x18] sm:$0xff] %v1316
        %1325 = vst [vmem:[%s423 + $0x20] sm:$0xff] %v1317
        %1326 = vst [vmem:[%s423 + $0x28] sm:$0xff] %v1318
        %1327 = vst [vmem:[%s423 + $0x30] sm:$0xff] %v1319
        %1328 = vst [vmem:[%s423 + $0x38] sm:$0xff] %v1320
        %v1329 = vld [vmem:[%s8] sm:$0x1]
        %v1330 = vld [vmem:[%s9] sm:$0x1]
        %1331 = vadd.xlane.f32.xlu0 %v1313
        %v1332 = vpop.xlane.xlu0 %1331
        %1333 = vadd.xlane.f32.xlu0 %v1314
        %v1334 = vpop.xlane.xlu0 %1333
        %1335 = vadd.xlane.f32.xlu0 %v1315
        %v1336 = vpop.xlane.xlu0 %1335
        %1337 = vadd.xlane.f32.xlu0 %v1316
        %v1338 = vpop.xlane.xlu0 %1337
        %1339 = vadd.xlane.f32.xlu0 %v1317
        %v1340 = vpop.xlane.xlu0 %1339
        %1341 = vadd.xlane.f32.xlu0 %v1318
        %v1342 = vpop.xlane.xlu0 %1341
        %1343 = vadd.xlane.f32.xlu0 %v1319
        %v1344 = vpop.xlane.xlu0 %1343
        %1345 = vadd.xlane.f32.xlu0 %v1320
        %v1346 = vpop.xlane.xlu0 %1345
        %v1347 = vrcp.pop 128.0
        %v1348 = vmul.f32 %v1332, %v1347
        %v1349 = vmul.f32 %v1334, %v1347
        %v1350 = vmul.f32 %v1336, %v1347
        %v1351 = vmul.f32 %v1338, %v1347
        %v1352 = vmul.f32 %v1340, %v1347
        %v1353 = vmul.f32 %v1342, %v1347
        %v1354 = vmul.f32 %v1344, %v1347
        %v1355 = vmul.f32 %v1346, %v1347
        %v1356 = vsub.f32 %v1313, %v1348
        %v1357 = vsub.f32 %v1314, %v1349
        %v1358 = vsub.f32 %v1315, %v1350
        %v1359 = vsub.f32 %v1316, %v1351
        %v1360 = vsub.f32 %v1317, %v1352
        %v1361 = vsub.f32 %v1318, %v1353
        %v1362 = vsub.f32 %v1319, %v1354
        %v1363 = vsub.f32 %v1320, %v1355
        %v1364 = vmul.f32 %v1356, %v1356
        %v1365 = vmul.f32 %v1357, %v1357
        %v1366 = vmul.f32 %v1358, %v1358
        %v1367 = vmul.f32 %v1359, %v1359
        %v1368 = vmul.f32 %v1360, %v1360
        %v1369 = vmul.f32 %v1361, %v1361
        %v1370 = vmul.f32 %v1362, %v1362
        %v1371 = vmul.f32 %v1363, %v1363
        %1372 = vadd.xlane.f32.xlu0 %v1364
        %v1373 = vpop.xlane.xlu0 %1372
        %1374 = vadd.xlane.f32.xlu0 %v1365
        %v1375 = vpop.xlane.xlu0 %1374
        %1376 = vadd.xlane.f32.xlu0 %v1366
        %v1377 = vpop.xlane.xlu0 %1376
        %1378 = vadd.xlane.f32.xlu0 %v1367
        %v1379 = vpop.xlane.xlu0 %1378
        %1380 = vadd.xlane.f32.xlu0 %v1368
        %v1381 = vpop.xlane.xlu0 %1380
        %1382 = vadd.xlane.f32.xlu0 %v1369
        %v1383 = vpop.xlane.xlu0 %1382
        %1384 = vadd.xlane.f32.xlu0 %v1370
        %v1385 = vpop.xlane.xlu0 %1384
        %1386 = vadd.xlane.f32.xlu0 %v1371
        %v1387 = vpop.xlane.xlu0 %1386
        %v1388 = vmul.f32 %v1373, %v1347
        %v1389 = vmul.f32 %v1375, %v1347
        %v1390 = vmul.f32 %v1377, %v1347
        %v1391 = vmul.f32 %v1379, %v1347
        %v1392 = vmul.f32 %v1381, %v1347
        %v1393 = vmul.f32 %v1383, %v1347
        %v1394 = vmul.f32 %v1385, %v1347
        %v1395 = vmul.f32 %v1387, %v1347
        %v1396 = vadd.f32 %v1388, 1e-05
        %v1397 = vadd.f32 %v1389, 1e-05
        %v1398 = vadd.f32 %v1390, 1e-05
        %v1399 = vadd.f32 %v1391, 1e-05
        %v1400 = vadd.f32 %v1392, 1e-05
        %v1401 = vadd.f32 %v1393, 1e-05
        %v1402 = vadd.f32 %v1394, 1e-05
        %v1403 = vadd.f32 %v1395, 1e-05
        %v1404 = vrsqrt.pop %v1396
        %v1405 = vrsqrt.pop %v1397
        %v1406 = vrsqrt.pop %v1398
        %v1407 = vrsqrt.pop %v1399
        %v1408 = vrsqrt.pop %v1400
        %v1409 = vrsqrt.pop %v1401
        %v1410 = vrsqrt.pop %v1402
        %v1411 = vrsqrt.pop %v1403
        %v1412 = vmul.f32 %v1356, %v1404
        %v1413 = vmul.f32 %v1357, %v1405
        %v1414 = vmul.f32 %v1358, %v1406
        %v1415 = vmul.f32 %v1359, %v1407
        %v1416 = vmul.f32 %v1360, %v1408
        %v1417 = vmul.f32 %v1361, %v1409
        %v1418 = vmul.f32 %v1362, %v1410
        %v1419 = vmul.f32 %v1363, %v1411
        %v1421 = vlaneseq
        %v1422 = vshrl.u32 %v1421, 7
        %v1423 = vsub.s32 0, %v1422
        %v1424 = vrot.slane %v1329, %v1423
        %v1426 = vmul.f32 %v1412, %v1424
        %v1427 = vmul.f32 %v1413, %v1424
        %v1428 = vmul.f32 %v1414, %v1424
        %v1429 = vmul.f32 %v1415, %v1424
        %v1430 = vmul.f32 %v1416, %v1424
        %v1431 = vmul.f32 %v1417, %v1424
        %v1432 = vmul.f32 %v1418, %v1424
        %v1433 = vmul.f32 %v1419, %v1424
        %v1435 = vlaneseq
        %v1436 = vshrl.u32 %v1435, 7
        %v1437 = vsub.s32 0, %v1436
        %v1438 = vrot.slane %v1330, %v1437
        %v1440 = vadd.f32 %v1426, %v1438
        %v1441 = vadd.f32 %v1427, %v1438
        %v1442 = vadd.f32 %v1428, %v1438
        %v1443 = vadd.f32 %v1429, %v1438
        %v1444 = vadd.f32 %v1430, %v1438
        %v1445 = vadd.f32 %v1431, %v1438
        %v1446 = vadd.f32 %v1432, %v1438
        %v1447 = vadd.f32 %v1433, %v1438
        %1448 = vst [vmem:[%s430] sm:$0xff] %v1440
        %1449 = vst [vmem:[%s430 + $0x8] sm:$0xff] %v1441
        %1450 = vst [vmem:[%s430 + $0x10] sm:$0xff] %v1442
        %1451 = vst [vmem:[%s430 + $0x18] sm:$0xff] %v1443
        %1452 = vst [vmem:[%s430 + $0x20] sm:$0xff] %v1444
        %1453 = vst [vmem:[%s430 + $0x28] sm:$0xff] %v1445
        %1454 = vst [vmem:[%s430 + $0x30] sm:$0xff] %v1446
        %1455 = vst [vmem:[%s430 + $0x38] sm:$0xff] %v1447
        %s1456 = sand.u32 %s273, 1
        %s1457 = scalar_lea.sflag [#allocation3], %s1456
        %s1458 = sand.u32 %s273, 1
        %s1459 = smul.addr %s1458, 64
        %s1460 = scalar_lea.vmem [#allocation2], %s1459
        %s1461 = sand.u32 %s301, 1
        %s1462 = scalar_lea.sflag [#allocation5], %s1461
        %s1463 = sand.u32 %s301, 1
        %s1464 = smul.addr %s1463, 64
        %s1465 = scalar_lea.vmem [#allocation4], %s1464
        // Predicated region
        $region61: #{tpu_custom_call.1} parent=59 // pred_check
          %p1466 = pneg %p283
        $region62: #{tpu_custom_call.1} parent=59 // pred_check_branch
          %1468 = sbr.rel (%p1466) target = $region64
        $region63: #{tpu_custom_call.1} parent=59 // pred_region
          %s1469 = smul.u32 8, %s34
          %s1471 = ssub.s32 1024, 1024
          %1472 = vsyncadd %s1457, %s1471
          %s1473 = smul.addr %s33, 8
          %s1474 = sadd.s32 %s1469, %s1473
          %s1475 = smul.addr %s1474, 128
          %s1476 = scalar_lea.hbm %s10, %s1475
          %s1477 = sshll.u32 %s1460, 4
          %s1478 = int_to_ptr.vmem [resolvable:$true] %s1477
          %1483 = dma.vmem_to_hbm [thread:$0]  %s1478, 1024, %s1476, %s1457, 128, 128, 8
        $region64: #{tpu_custom_call.1} parent=59 // pred_fallthru
          _
        // Predicated region
        $region65: #{tpu_custom_call.1} parent=59 // pred_check
          %p1484 = pneg %p311
        $region66: #{tpu_custom_call.1} parent=59 // pred_check_branch
          %1486 = sbr.rel (%p1484) target = $region68
        $region67: #{tpu_custom_call.1} parent=59 // pred_region
          %s1487 = smul.u32 8, %s34
          %s1489 = ssub.s32 1024, 1024
          %1490 = vsyncadd %s1462, %s1489
          %s1491 = smul.addr %s33, 8
          %s1492 = sadd.s32 %s1487, %s1491
          %s1493 = smul.addr %s1492, 128
          %s1494 = scalar_lea.hbm %s11, %s1493
          %s1495 = sshll.u32 %s1465, 4
          %s1496 = int_to_ptr.vmem [resolvable:$true] %s1495
          %1501 = dma.vmem_to_hbm [thread:$0]  %s1496, 1024, %s1494, %s1462, 128, 128, 8
        $region68: #{tpu_custom_call.1} parent=59 // pred_fallthru
          _
      $region60: #{tpu_custom_call.1} parent=5 // pred_fallthru
        _
      %p1502 = scmp.le.s32.totalorder 2, %s24
      // Predicated region
      $region69: #{tpu_custom_call.1} parent=5 // pred_check
        %p1503 = pneg %p1502
      $region70: #{tpu_custom_call.1} parent=5 // pred_check_branch
        %1505 = sbr.rel (%p1503) target = $region72
      $region71: #{tpu_custom_call.1} parent=5 // pred_region
        %s1506 = ssub.s32 %s24, 2
        // Predicated region
        $region73: #{tpu_custom_call.1} parent=71 // pred_check
          %p1507 = pneg %p289
        $region74: #{tpu_custom_call.1} parent=71 // pred_check_branch
          %1509 = sbr.rel (%p1507) target = $region76
        $region75: #{tpu_custom_call.1} parent=71 // pred_region
          %s1510 = sand.u32 %s274, 1
          %s1511 = scalar_lea.sflag [#allocation3], %s1510
          %s1512 = sand.u32 %s274, 1
          %s1513 = smul.addr %s1512, 64
          %s1514 = scalar_lea.vmem [#allocation2], %s1513
          %1515 = dma.done %s1511, 1024
        $region76: #{tpu_custom_call.1} parent=71 // pred_fallthru
          _
        // Predicated region
        $region77: #{tpu_custom_call.1} parent=71 // pred_check
          %p1516 = pneg %p317
        $region78: #{tpu_custom_call.1} parent=71 // pred_check_branch
          %1518 = sbr.rel (%p1516) target = $region80
        $region79: #{tpu_custom_call.1} parent=71 // pred_region
          %s1519 = sand.u32 %s302, 1
          %s1520 = scalar_lea.sflag [#allocation5], %s1519
          %s1521 = sand.u32 %s302, 1
          %s1522 = smul.addr %s1521, 64
          %s1523 = scalar_lea.vmem [#allocation4], %s1522
          %1524 = dma.done %s1520, 1024
        $region80: #{tpu_custom_call.1} parent=71 // pred_fallthru
          _
      $region72: #{tpu_custom_call.1} parent=5 // pred_fallthru
        _
    $region6: #{tpu_custom_call.1} parent=1 // loop_footer
      %s28 = sadd.s32 1, %s24
    $region7: #{tpu_custom_call.1} parent=1 // loop_footer_branch
      %23 = sbr.rel target = $region3
    $region8: #{tpu_custom_call.1} parent=1 // loop_exit
      _
    %1525 = vsyncpa [#allocation3], 1
    %s1526 = scalar_lea.sflag [#allocation3], 1
    %1527 = vsyncpa %s1526, 1
    %1528 = vsyncpa [#allocation5], 1
    %s1529 = scalar_lea.sflag [#allocation5], 1
    %1530 = vsyncpa %s1529, 1

</llo_original>
